<compile_context>
chip_gen: v5e
topology: v5e:2x2
jax: 0.10.0
libtpu: 0.0.40
codegen_flags: <defaults>
</compile_context>

<pallas_src>
import jax
import jax.numpy as jnp
from jax.experimental import pallas as pl
from jax.experimental.pallas import tpu as pltpu

LAMBDA_REC = 1.0
CORR_TEMPERATURE = 10.0


def _chip_config():
    """Per-generation knobs: bf16-exp availability and VMEM cap."""
    try:
        kind = jax.devices()[0].device_kind.lower()
    except Exception:
        kind = ''
    is_v7 = ('v7' in kind) or ('7x' in kind)
    is_v6 = 'v6' in kind
    is_v5 = 'v5' in kind
    # v6e / v7x have bf16 EUP; v5e (and older) emulate bf16 elementwise -> keep f32.
    exp_bf16 = is_v6 or is_v7
    if is_v7:
        vmem_cap = 40 << 20          # 64 MiB physical VMEM per TC: leave headroom
    elif is_v6 or is_v5:
        vmem_cap = 96 << 20          # 128 MiB physical VMEM
    else:
        vmem_cap = 32 << 20
    return exp_bf16, vmem_cap


# ----------------------------------------------------------------------------
# Fused kernel: pose encoder + streamed correlation/warp + decoder (netG).
# One grid step per (batch, pose-tile); identity tiles streamed in-kernel from
# pre-encoded bf16 identity features (hoisted to XLA, once per batch).
# ----------------------------------------------------------------------------
def _make_kernel(tile_p, tile_id, n_id_tiles, unroll, exp_bf16):
    def kernel(idn_ref, idpa_ref, posep_ref, idf_ref,
               we1_ref, be1_ref, we2_ref, be2_ref,
               wd1f_ref, wd1w_ref, bd1_ref, wd2_ref, bd2_ref,
               out_ref):
        # ---- pose-side encoder (once per grid step) ----
        we1 = we1_ref[...]                                   # (H, 3)
        posep = posep_ref[...]                               # (3, TILE_P)
        # K=3 input projection as a VPU broadcast-FMA chain; an MXU dot would
        # pad the K=3 contraction for <3% utilization.
        h = (we1[:, 0:1] * posep[0:1, :]
             + we1[:, 1:2] * posep[1:2, :]
             + we1[:, 2:3] * posep[2:3, :]
             + be1_ref[...])
        h = jnp.maximum(h, 0.0)
        pose_f = jnp.dot(we2_ref[...], h,
                         preferred_element_type=jnp.float32) + be2_ref[...]   # (H, TILE_P)
        s = jax.lax.rsqrt(jnp.sum(pose_f * pose_f, axis=0, keepdims=True) + 1e-6)
        # Temperature folded into the small (H, TILE_P) operand; kept channel-
        # major (no transpose) — the corr dot contracts axis 0 of BOTH operands.
        pose_n = (pose_f * (s * CORR_TEMPERATURE)).astype(jnp.bfloat16)        # (H, TILE_P)

        # ---- streamed (flash-style) correlation over identity tiles ----
        # Softmax normalization deferred (unnormalized exp + row-sum).  Row-max
        # subtraction skipped: both feature sets are L2-normalized so every
        # logit lies in [-CORR_TEMPERATURE, CORR_TEMPERATURE] (asserted in the
        # wrapper to stay far below exp overflow ~88 for f32/bf16).
        def id_tile_body(t, acc):
            m0 = pl.multiple_of(t * tile_id, tile_id)
            idn_t = idn_ref[:, pl.ds(m0, tile_id)]           # (H, TILE_ID)  bf16
            idpa_t = idpa_ref[:, pl.ds(m0, tile_id)]         # (4, TILE_ID)  bf16, row 3 == 1
            corr = jax.lax.dot_general(                      # (TILE_P, TILE_ID) f32
                pose_n, idn_t,
                dimension_numbers=(((0,), (0,)), ((), ())),
                preferred_element_type=jnp.float32)
            if exp_bf16:
                e = jnp.exp(corr.astype(jnp.bfloat16))       # bf16 EUP (v6e / v7x)
            else:
                e = jnp.exp(corr).astype(jnp.bfloat16)       # f32 EUP (v5e / older)
            # Fused warp numerator + row-sum: contract the LAST (identity) axis
            # of BOTH operands -> (4, TILE_P); rows 0..2 = sum_m e * x_m,
            # row 3 = sum_m e.  No N x N transpose is ever formed.
            upd = jax.lax.dot_general(
                idpa_t, e,
                dimension_numbers=(((1,), (1,)), ((), ())),
                preferred_element_type=jnp.float32)
            return acc + upd

        acc = jax.lax.fori_loop(0, n_id_tiles, id_tile_body,
                                jnp.zeros((4, tile_p), jnp.float32),
                                unroll=unroll)
        # Deferred softmax normalization: single (3, TILE_P) scale, EUP recip.
        warp_t = acc[0:3, :] * pl.reciprocal(acc[3:4, :], approx=True)         # (3, TILE_P)

        # ---- decoder (netG): per-point MLP over [id_features ; warp_out] ----
        # (identity & pose clouds share N and point ordering here — modeling
        # assumption vs the real netG, see notes.)
        idf_self = idf_ref[...]                              # (H, TILE_P) f32
        wd1w = wd1w_ref[...]
        h2 = (jnp.dot(wd1f_ref[...], idf_self, preferred_element_type=jnp.float32)
              + wd1w[:, 0:1] * warp_t[0:1, :]                # K=3 branch on the VPU
              + wd1w[:, 1:2] * warp_t[1:2, :]
              + wd1w[:, 2:3] * warp_t[2:3, :]
              + bd1_ref[...])
        h2 = jnp.maximum(h2, 0.0)
        fake = jnp.dot(wd2_ref[...], h2,
                       preferred_element_type=jnp.float32) + bd2_ref[...]      # (3, TILE_P)

        # Single lane-dense output slab per grid step: rows 0:3 fake, 3:6 warp.
        out_ref[0:3, :] = fake
        out_ref[3:6, :] = warp_t

    return kernel


def ver2ver_generate(params, identity_points, pose_points, *,
                     tile_p=512, tile_id=1024):
    """identity_points / pose_points: (B, 3, N) float32."""
    identity_points = identity_points.astype(jnp.float32)
    pose_points = pose_points.astype(jnp.float32)
    B, C, N = identity_points.shape
    H = params['we2'].shape[0]

    exp_bf16, vmem_cap = _chip_config()

    tile_p = min(tile_p, N)
    tile_id = min(tile_id, N)
    if (N % 128 != 0 or N % tile_p != 0 or N % tile_id != 0
            or tile_p % 128 != 0 or tile_id % 128 != 0):
        raise ValueError("N must be a multiple of 128 and of the tile sizes")

    n_pose_tiles = N // tile_p
    n_id_tiles = N // tile_id
    # Cap unroll at 2: each iteration carries (TILE_P, TILE_ID) temporaries and
    # full unrolling bloats live ranges / VMEM (especially on v7x's 64 MiB).
    unroll = 2 if n_id_tiles >= 2 else 1

    # No-row-max softmax invariant: L2-normalized features bound every logit to
    # [-CORR_TEMPERATURE, CORR_TEMPERATURE]; exp overflows f32/bf16 near 88.
    assert CORR_TEMPERATURE < 80.0, "deferred (no-max) softmax requires bounded logits"

    # ---- identity-side encoder hoisted OUT of the kernel: computed once per
    # batch in plain XLA instead of n_pose_tiles times inside the hot loop. ----
    prec = jax.lax.Precision.HIGHEST
    h = (jnp.einsum('hc,bcn->bhn', params['we1'], identity_points, precision=prec)
         + params['be1'])
    h = jnp.maximum(h, 0.0)
    idf = (jnp.einsum('hk,bkn->bhn', params['we2'], h, precision=prec)
           + params['be2'])                                                   # (B, H, N) f32
    idn_bf = (idf * jax.lax.rsqrt(jnp.sum(idf * idf, axis=1, keepdims=True) + 1e-6)
              ).astype(jnp.bfloat16)                                          # (B, H, N) bf16
    # Identity coords augmented with a ones-row so one MXU dot per id-tile
    # yields both the warp numerator (rows 0..2) and the softmax row-sum (row 3).
    idpa_bf = jnp.concatenate(
        [identity_points, jnp.ones((B, 1, N), jnp.float32)], axis=1
    ).astype(jnp.bfloat16)                                                    # (B, 4, N) bf16

    weight_order = ['we1', 'be1', 'we2', 'be2', 'wd1f', 'wd1w', 'bd1', 'wd2', 'bd2']
    weights = [params[k].astype(jnp.float32) for k in weight_order]

    def wspec(shape):
        rank = len(shape)
        return pl.BlockSpec(shape, lambda b, j, _r=rank: (0,) * _r)

    in_specs = (
        [pl.BlockSpec((None, H, N), lambda b, j: (b, 0, 0)),        # idn_bf (full per batch)
         pl.BlockSpec((None, C + 1, N), lambda b, j: (b, 0, 0)),    # idpa_bf (full per batch)
         pl.BlockSpec((None, C, tile_p), lambda b, j: (b, 0, j)),   # pose tile
         pl.BlockSpec((None, H, tile_p), lambda b, j: (b, 0, j))]   # id-feature tile (decoder)
        + [wspec(w.shape) for w in weights])

    out_specs = pl.BlockSpec((None, 2 * C, tile_p), lambda b, j: (b, 0, j))
    out_shape = jax.ShapeDtypeStruct((B, 2 * C, N), jnp.float32)

    # Advisory cost so XLA schedules the (large) custom call correctly.
    cost = pl.CostEstimate(
        flops=int(2 * B * N * N * (H + C + 1) + 4 * B * N * H * (H + 2 * C)),
        transcendentals=int(B * N * N + 2 * B * N),
        bytes_accessed=int(2 * B * (H + C + 1) * N          # bf16 identity inputs
                           + 4 * B * (H + C) * N            # idf + pose (f32)
                           + 4 * B * 2 * C * N              # fused output slab
                           + 4 * sum(int(w.size) for w in weights)))

    # VMEM budget derived from the chosen tiles (streamed corr/exp tiles
    # dominate), clamped to a per-generation cap (v7x: 64 MiB physical).
    vmem_est = (2 * 2 * (H + C + 1) * N                      # bf16 identity inputs, x2 bufs
                + 2 * 4 * (C + H + 2 * C) * tile_p           # pose, idf, output blocks
                + max(2, unroll) * tile_p * tile_id * 6      # corr f32 + exp bf16 live
                + 16 * H * tile_p                            # pose-feature temporaries
                + 8 * sum(int(w.size) for w in weights)
                + (4 << 20))
    vmem_limit = int(min(max(vmem_est, 8 << 20), vmem_cap))

    kernel = _make_kernel(tile_p, tile_id, n_id_tiles, unroll, exp_bf16)

    out = pl.pallas_call(
        kernel,
        out_shape=out_shape,
        grid_spec=pltpu.PrefetchScalarGridSpec(
            num_scalar_prefetch=0,
            grid=(B, n_pose_tiles),
            in_specs=in_specs,
            out_specs=out_specs),
        compiler_params=pltpu.CompilerParams(
            dimension_semantics=("parallel", "parallel"),
            vmem_limit_bytes=vmem_limit),
        cost_estimate=cost,
    )(idn_bf, idpa_bf, pose_points, idf, *weights)

    fake = out[:, 0:C, :]
    warp = out[:, C:2 * C, :]
    return fake, warp, idf


# ----------------------------------------------------------------------------
# Ver2VerModel.forward equivalent (train / inference mode dispatch).
# ----------------------------------------------------------------------------
def ver2ver_forward(params, identity_points, pose_points, gt_points=None,
                    id_face=None, mode='inference', tile_p=512, tile_id=1024):
    if mode == 'inference':
        pass  # inputs already (B, 3, N), matching the PyTorch inference path
    else:
        identity_points = jnp.swapaxes(identity_points, 2, 1)  # (B,N,3)->(B,3,N)
        pose_points = jnp.swapaxes(pose_points, 2, 1)
        if gt_points is not None:
            gt_points = jnp.swapaxes(gt_points, 2, 1)

    fake_points, warp_out, id_features = ver2ver_generate(
        params, identity_points, pose_points, tile_p=tile_p, tile_id=tile_id)

    if mode == 'train':
        losses = {}
        # TODO(synk): edge_loss (util.compute_score / util.get_target over id_face)
        # requires mesh topology code not provided; only rec_loss is reproduced.
        losses['edge_loss'] = jnp.float32(0.0)
        losses['rec_loss'] = jnp.mean((fake_points - gt_points) ** 2) * LAMBDA_REC
        out = {
            'fake_points': fake_points,
            'identity_points': identity_points,
            'pose_points': pose_points,
            'warp_out': warp_out,
        }
        return losses, out
    elif mode == 'inference':
        return {
            'fake_points': fake_points,
            'warp_out': warp_out,
            'id_features': id_features,
            'identity_points': identity_points,
            'pose_points': pose_points,
        }
    else:
        raise ValueError('|mode| is invalid')


# ----------------------------------------------------------------------------
# Deterministic synthetic parameters (shapes implied by the pointwise-conv
# encoder / correlation / decoder structure of netCorr + netG).
# ----------------------------------------------------------------------------
def init_params(key, hidden=32):
    ks = jax.random.split(key, 5)
    return {
        'we1': jax.random.normal(ks[0], (hidden, 3), jnp.float32) * 0.5,
        'be1': jnp.zeros((hidden, 1), jnp.float32),
        'we2': jax.random.normal(ks[1], (hidden, hidden), jnp.float32)
               * (1.0 / jnp.sqrt(hidden)),
        'be2': jnp.zeros((hidden, 1), jnp.float32),
        'wd1f': jax.random.normal(ks[2], (hidden, hidden), jnp.float32)
                * (1.0 / jnp.sqrt(hidden)),
        'wd1w': jax.random.normal(ks[3], (hidden, 3), jnp.float32) * 0.5,
        'bd1': jnp.zeros((hidden, 1), jnp.float32),
        'wd2': jax.random.normal(ks[4], (3, hidden), jnp.float32)
               * (1.0 / jnp.sqrt(hidden)),
        'bd2': jnp.zeros((3, 1), jnp.float32),
    }


# Pure-JAX reference of the same computation, for a correctness sanity check.
def reference_generate(params, idp, posep):
    prec = jax.lax.Precision.HIGHEST

    def enc(x):
        h = jnp.einsum('hc,bcn->bhn', params['we1'], x, precision=prec) + params['be1']
        h = jnp.maximum(h, 0.0)
        return jnp.einsum('hk,bkn->bhn', params['we2'], h, precision=prec) + params['be2']

    idf = enc(idp)
    pf = enc(posep)
    idn = idf * jax.lax.rsqrt(jnp.sum(idf * idf, axis=1, keepdims=True) + 1e-6)
    pn = pf * jax.lax.rsqrt(jnp.sum(pf * pf, axis=1, keepdims=True) + 1e-6)
    corr = jnp.einsum('bhn,bhm->bnm', pn, idn, precision=prec) * CORR_TEMPERATURE
    att = jax.nn.softmax(corr, axis=-1)
    warp = jnp.einsum('bnm,bcm->bcn', att, idp, precision=prec)
    h = (jnp.einsum('hk,bkn->bhn', params['wd1f'], idf, precision=prec)
         + jnp.einsum('hc,bcn->bhn', params['wd1w'], warp, precision=prec)
         + params['bd1'])
    h = jnp.maximum(h, 0.0)
    fake = jnp.einsum('ch,bhn->bcn', params['wd2'], h, precision=prec) + params['bd2']
    return fake, warp, idf


if __name__ == "__main__":
    key = jax.random.PRNGKey(0)
    kp, k1, k2, k3 = jax.random.split(key, 4)

    B, N, H = 2, 256, 32
    params = init_params(kp, hidden=H)

    # Train-mode inputs, as in the PyTorch module: (B, N, 3) point clouds.
    identity_points = jax.random.normal(k1, (B, N, 3), jnp.float32)
    pose_points = jax.random.normal(k2, (B, N, 3), jnp.float32)
    gt_points = jax.random.normal(k3, (B, N, 3), jnp.float32)

    # tile_p / tile_id < N so both the pose-tile grid axis and the in-kernel
    # streamed identity-tile loop run multiple steps.
    losses, out = ver2ver_forward(params, identity_points, pose_points,
                                  gt_points=gt_points, id_face=None, mode='train',
                                  tile_p=128, tile_id=128)
    jax.block_until_ready(out['fake_points'])

    # Also exercise the inference path (inputs already channel-first).
    inf_out = ver2ver_forward(params,
                              jnp.swapaxes(identity_points, 2, 1),
                              jnp.swapaxes(pose_points, 2, 1),
                              mode='inference', tile_p=128, tile_id=128)
    jax.block_until_ready(inf_out['fake_points'])

    # Correctness check against a pure-JAX reference (Precision.HIGHEST).
    ref_fake, ref_warp, ref_idf = reference_generate(
        params,
        jnp.swapaxes(identity_points, 2, 1),
        jnp.swapaxes(pose_points, 2, 1))

    assert out['fake_points'].shape == (B, 3, N)
    assert out['warp_out'].shape == (B, 3, N)
    assert inf_out['id_features'].shape == (B, H, N)
    assert bool(jnp.all(jnp.isfinite(out['fake_points'])))
    # bf16 MXU operands + (on v6e/v7x) bf16 exp on the correlation / warp path
    # loosen the match against the Precision.HIGHEST reference; softmax stays
    # consistent (same rounded e in numerator and denominator) so 7.5e-2 is a
    # comfortable bound on both f32-exp and bf16-exp chips.
    TOL = 7.5e-2
    assert bool(jnp.allclose(out['fake_points'], ref_fake, atol=TOL, rtol=TOL))
    assert bool(jnp.allclose(out['warp_out'], ref_warp, atol=TOL, rtol=TOL))
    assert bool(jnp.allclose(inf_out['fake_points'], ref_fake, atol=TOL, rtol=TOL))
    # id_features is now computed once per batch in XLA at HIGHEST precision,
    # identically to the reference.
    assert bool(jnp.allclose(inf_out['id_features'], ref_idf, atol=1e-4, rtol=1e-4))
    assert bool(jnp.isfinite(losses['rec_loss']))

    print("KERNEL_OK")
</pallas_src>

<mosaic_0001>
module attributes {stable_mosaic.version = 11 : i64} {
  func.func @kernel(%arg0: i32, %arg1: i32, %arg2: memref<1x32x256xbf16, #tpu.memory_space<vmem>>, %arg3: memref<1x4x256xbf16, #tpu.memory_space<vmem>>, %arg4: memref<1x3x128xf32, #tpu.memory_space<vmem>>, %arg5: memref<1x32x128xf32, #tpu.memory_space<vmem>>, %arg6: memref<32x3xf32, #tpu.memory_space<vmem>>, %arg7: memref<32x1xf32, #tpu.memory_space<vmem>>, %arg8: memref<32x32xf32, #tpu.memory_space<vmem>>, %arg9: memref<32x1xf32, #tpu.memory_space<vmem>>, %arg10: memref<32x32xf32, #tpu.memory_space<vmem>>, %arg11: memref<32x3xf32, #tpu.memory_space<vmem>>, %arg12: memref<32x1xf32, #tpu.memory_space<vmem>>, %arg13: memref<3x32xf32, #tpu.memory_space<vmem>>, %arg14: memref<3x1xf32, #tpu.memory_space<vmem>>, %arg15: memref<1x6x128xf32, #tpu.memory_space<vmem>>) attributes {dimension_semantics = [#tpu.dimension_semantics<parallel>, #tpu.dimension_semantics<parallel>], iteration_bounds = array<i64: 2, 2>, scalar_prefetch = 0 : i64, scratch_operands = 0 : i64, tpu.core_type = #tpu.core_type<tc>, window_params = [{transform_indices = @transform_0, window_bounds = array<i64: 1, 32, 256>}, {transform_indices = @transform_1, window_bounds = array<i64: 1, 4, 256>}, {transform_indices = @transform_2, window_bounds = array<i64: 1, 3, 128>}, {transform_indices = @transform_3, window_bounds = array<i64: 1, 32, 128>}, {pipeline_mode = #tpu.pipeline_mode<synchronous>, transform_indices = @transform_4, window_bounds = array<i64: 32, 3>}, {pipeline_mode = #tpu.pipeline_mode<synchronous>, transform_indices = @transform_5, window_bounds = array<i64: 32, 1>}, {pipeline_mode = #tpu.pipeline_mode<synchronous>, transform_indices = @transform_6, window_bounds = array<i64: 32, 32>}, {pipeline_mode = #tpu.pipeline_mode<synchronous>, transform_indices = @transform_7, window_bounds = array<i64: 32, 1>}, {pipeline_mode = #tpu.pipeline_mode<synchronous>, transform_indices = @transform_8, window_bounds = array<i64: 32, 32>}, {pipeline_mode = #tpu.pipeline_mode<synchronous>, transform_indices = @transform_9, window_bounds = array<i64: 32, 3>}, {pipeline_mode = #tpu.pipeline_mode<synchronous>, transform_indices = @transform_10, window_bounds = array<i64: 32, 1>}, {pipeline_mode = #tpu.pipeline_mode<synchronous>, transform_indices = @transform_11, window_bounds = array<i64: 3, 32>}, {pipeline_mode = #tpu.pipeline_mode<synchronous>, transform_indices = @transform_12, window_bounds = array<i64: 3, 1>}, {transform_indices = @transform_13, window_bounds = array<i64: 1, 6, 128>}]} {
    %c0 = arith.constant 0 : index
    %c0_0 = arith.constant 0 : index
    %0 = vector.load %arg6[%c0, %c0_0] : memref<32x3xf32, #tpu.memory_space<vmem>>, vector<32x3xf32>
    %c0_1 = arith.constant 0 : index
    %c0_2 = arith.constant 0 : index
    %c0_3 = arith.constant 0 : index
    %1 = vector.load %arg4[%c0_1, %c0_2, %c0_3] : memref<1x3x128xf32, #tpu.memory_space<vmem>>, vector<1x3x128xf32>
    %2 = vector.shape_cast %1 : vector<1x3x128xf32> to vector<3x128xf32>
    %3 = vector.extract_strided_slice %0 {offsets = [0, 0], sizes = [32, 1], strides = [1, 1]} : vector<32x3xf32> to vector<32x1xf32>
    %4 = vector.extract_strided_slice %2 {offsets = [0, 0], sizes = [1, 128], strides = [1, 1]} : vector<3x128xf32> to vector<1x128xf32>
    %5 = vector.broadcast %3 : vector<32x1xf32> to vector<32x128xf32>
    %6 = vector.broadcast %4 : vector<1x128xf32> to vector<32x128xf32>
    %7 = arith.mulf %5, %6 : vector<32x128xf32>
    %8 = vector.extract_strided_slice %0 {offsets = [0, 1], sizes = [32, 1], strides = [1, 1]} : vector<32x3xf32> to vector<32x1xf32>
    %9 = vector.extract_strided_slice %2 {offsets = [1, 0], sizes = [1, 128], strides = [1, 1]} : vector<3x128xf32> to vector<1x128xf32>
    %10 = vector.broadcast %8 : vector<32x1xf32> to vector<32x128xf32>
    %11 = vector.broadcast %9 : vector<1x128xf32> to vector<32x128xf32>
    %12 = arith.mulf %10, %11 : vector<32x128xf32>
    %13 = arith.addf %7, %12 : vector<32x128xf32>
    %14 = vector.extract_strided_slice %0 {offsets = [0, 2], sizes = [32, 1], strides = [1, 1]} : vector<32x3xf32> to vector<32x1xf32>
    %15 = vector.extract_strided_slice %2 {offsets = [2, 0], sizes = [1, 128], strides = [1, 1]} : vector<3x128xf32> to vector<1x128xf32>
    %16 = vector.broadcast %14 : vector<32x1xf32> to vector<32x128xf32>
    %17 = vector.broadcast %15 : vector<1x128xf32> to vector<32x128xf32>
    %18 = arith.mulf %16, %17 : vector<32x128xf32>
    %19 = arith.addf %13, %18 : vector<32x128xf32>
    %c0_4 = arith.constant 0 : index
    %c0_5 = arith.constant 0 : index
    %20 = vector.load %arg7[%c0_4, %c0_5] : memref<32x1xf32, #tpu.memory_space<vmem>>, vector<32x1xf32>
    %21 = vector.broadcast %20 : vector<32x1xf32> to vector<32x128xf32>
    %22 = arith.addf %19, %21 : vector<32x128xf32>
    %cst = arith.constant 0.000000e+00 : f32
    %23 = vector.broadcast %cst : f32 to vector<32x128xf32>
    %24 = arith.maximumf %22, %23 : vector<32x128xf32>
    %c0_6 = arith.constant 0 : index
    %c0_7 = arith.constant 0 : index
    %25 = vector.load %arg8[%c0_6, %c0_7] : memref<32x32xf32, #tpu.memory_space<vmem>>, vector<32x32xf32>
    %cst_8 = arith.constant dense<0.000000e+00> : vector<32x128xf32>
    %26 = tpu.matmul %25, %24, %cst_8 {dimension_numbers = #tpu.dot_dimension_numbers<[1], [0], [0], [1], [0, 0, 1, 1], [], []>} : vector<32x32xf32>, vector<32x128xf32>, vector<32x128xf32> -> vector<32x128xf32>
    %c0_9 = arith.constant 0 : index
    %c0_10 = arith.constant 0 : index
    %27 = vector.load %arg9[%c0_9, %c0_10] : memref<32x1xf32, #tpu.memory_space<vmem>>, vector<32x1xf32>
    %28 = vector.broadcast %27 : vector<32x1xf32> to vector<32x128xf32>
    %29 = arith.addf %26, %28 : vector<32x128xf32>
    %30 = arith.mulf %29, %29 : vector<32x128xf32>
    %cst_11 = arith.constant dense<0.000000e+00> : vector<128xf32>
    %31 = vector.multi_reduction <add>, %30, %cst_11 [0] : vector<32x128xf32> to vector<128xf32>
    %32 = vector.shape_cast %31 : vector<128xf32> to vector<1x128xf32>
    %cst_12 = arith.constant 9.99999997E-7 : f32
    %33 = vector.broadcast %cst_12 : f32 to vector<1x128xf32>
    %34 = arith.addf %32, %33 : vector<1x128xf32>
    %35 = math.rsqrt %34 : vector<1x128xf32>
    %cst_13 = arith.constant 1.000000e+01 : f32
    %36 = vector.broadcast %cst_13 : f32 to vector<1x128xf32>
    %37 = arith.mulf %35, %36 : vector<1x128xf32>
    %38 = vector.broadcast %37 : vector<1x128xf32> to vector<32x128xf32>
    %39 = arith.mulf %29, %38 : vector<32x128xf32>
    %40 = arith.truncf %39 : vector<32x128xf32> to vector<32x128xbf16>
    %cst_14 = arith.constant 0.000000e+00 : f32
    %41 = vector.broadcast %cst_14 : f32 to vector<4x128xf32>
    %c0_i32 = arith.constant 0 : i32
    %c128_i32 = arith.constant 128 : i32
    %42 = arith.muli %c0_i32, %c128_i32 : i32
    %43 = tpu.assume_multiple %42, 128 : i32
    %c0_15 = arith.constant 0 : index
    %c0_16 = arith.constant 0 : index
    %44 = arith.index_cast %43 : i32 to index
    %45 = vector.load %arg2[%c0_15, %c0_16, %44] : memref<1x32x256xbf16, #tpu.memory_space<vmem>>, vector<1x32x128xbf16>
    %46 = vector.shape_cast %45 : vector<1x32x128xbf16> to vector<32x128xbf16>
    %c0_17 = arith.constant 0 : index
    %c0_18 = arith.constant 0 : index
    %47 = arith.index_cast %43 : i32 to index
    %48 = vector.load %arg3[%c0_17, %c0_18, %47] : memref<1x4x256xbf16, #tpu.memory_space<vmem>>, vector<1x4x128xbf16>
    %49 = vector.shape_cast %48 : vector<1x4x128xbf16> to vector<4x128xbf16>
    %cst_19 = arith.constant dense<0.000000e+00> : vector<128x128xf32>
    %50 = tpu.matmul %40, %46, %cst_19 {dimension_numbers = #tpu.dot_dimension_numbers<[0], [0], [1], [1], [0, 1, 1, 1], [], []>} : vector<32x128xbf16>, vector<32x128xbf16>, vector<128x128xf32> -> vector<128x128xf32>
    %51 = math.exp %50 : vector<128x128xf32>
    %52 = arith.truncf %51 : vector<128x128xf32> to vector<128x128xbf16>
    %cst_20 = arith.constant dense<0.000000e+00> : vector<4x128xf32>
    %53 = tpu.matmul %49, %52, %cst_20 {dimension_numbers = #tpu.dot_dimension_numbers<[1], [1], [0], [0], [0, 0, 1, 0], [], []>} : vector<4x128xbf16>, vector<128x128xbf16>, vector<4x128xf32> -> vector<4x128xf32>
    %54 = arith.addf %41, %53 : vector<4x128xf32>
    %c1_i32 = arith.constant 1 : i32
    %c128_i32_21 = arith.constant 128 : i32
    %55 = arith.muli %c1_i32, %c128_i32_21 : i32
    %56 = tpu.assume_multiple %55, 128 : i32
    %c0_22 = arith.constant 0 : index
    %c0_23 = arith.constant 0 : index
    %57 = arith.index_cast %56 : i32 to index
    %58 = vector.load %arg2[%c0_22, %c0_23, %57] : memref<1x32x256xbf16, #tpu.memory_space<vmem>>, vector<1x32x128xbf16>
    %59 = vector.shape_cast %58 : vector<1x32x128xbf16> to vector<32x128xbf16>
    %c0_24 = arith.constant 0 : index
    %c0_25 = arith.constant 0 : index
    %60 = arith.index_cast %56 : i32 to index
    %61 = vector.load %arg3[%c0_24, %c0_25, %60] : memref<1x4x256xbf16, #tpu.memory_space<vmem>>, vector<1x4x128xbf16>
    %62 = vector.shape_cast %61 : vector<1x4x128xbf16> to vector<4x128xbf16>
    %cst_26 = arith.constant dense<0.000000e+00> : vector<128x128xf32>
    %63 = tpu.matmul %40, %59, %cst_26 {dimension_numbers = #tpu.dot_dimension_numbers<[0], [0], [1], [1], [0, 1, 1, 1], [], []>} : vector<32x128xbf16>, vector<32x128xbf16>, vector<128x128xf32> -> vector<128x128xf32>
    %64 = math.exp %63 : vector<128x128xf32>
    %65 = arith.truncf %64 : vector<128x128xf32> to vector<128x128xbf16>
    %cst_27 = arith.constant dense<0.000000e+00> : vector<4x128xf32>
    %66 = tpu.matmul %62, %65, %cst_27 {dimension_numbers = #tpu.dot_dimension_numbers<[1], [1], [0], [0], [0, 0, 1, 0], [], []>} : vector<4x128xbf16>, vector<128x128xbf16>, vector<4x128xf32> -> vector<4x128xf32>
    %67 = arith.addf %54, %66 : vector<4x128xf32>
    %c2_i32 = arith.constant 2 : i32
    %68 = vector.extract_strided_slice %67 {offsets = [0, 0], sizes = [3, 128], strides = [1, 1]} : vector<4x128xf32> to vector<3x128xf32>
    %69 = vector.extract_strided_slice %67 {offsets = [3, 0], sizes = [1, 128], strides = [1, 1]} : vector<4x128xf32> to vector<1x128xf32>
    %70 = tpu.reciprocal %69 {approx = true} : vector<1x128xf32> -> vector<1x128xf32>
    %71 = vector.broadcast %70 : vector<1x128xf32> to vector<3x128xf32>
    %72 = arith.mulf %68, %71 : vector<3x128xf32>
    %c0_28 = arith.constant 0 : index
    %c0_29 = arith.constant 0 : index
    %c0_30 = arith.constant 0 : index
    %73 = vector.load %arg5[%c0_28, %c0_29, %c0_30] : memref<1x32x128xf32, #tpu.memory_space<vmem>>, vector<1x32x128xf32>
    %74 = vector.shape_cast %73 : vector<1x32x128xf32> to vector<32x128xf32>
    %c0_31 = arith.constant 0 : index
    %c0_32 = arith.constant 0 : index
    %75 = vector.load %arg11[%c0_31, %c0_32] : memref<32x3xf32, #tpu.memory_space<vmem>>, vector<32x3xf32>
    %c0_33 = arith.constant 0 : index
    %c0_34 = arith.constant 0 : index
    %76 = vector.load %arg10[%c0_33, %c0_34] : memref<32x32xf32, #tpu.memory_space<vmem>>, vector<32x32xf32>
    %cst_35 = arith.constant dense<0.000000e+00> : vector<32x128xf32>
    %77 = tpu.matmul %76, %74, %cst_35 {dimension_numbers = #tpu.dot_dimension_numbers<[1], [0], [0], [1], [0, 0, 1, 1], [], []>} : vector<32x32xf32>, vector<32x128xf32>, vector<32x128xf32> -> vector<32x128xf32>
    %78 = vector.extract_strided_slice %75 {offsets = [0, 0], sizes = [32, 1], strides = [1, 1]} : vector<32x3xf32> to vector<32x1xf32>
    %79 = vector.extract_strided_slice %72 {offsets = [0, 0], sizes = [1, 128], strides = [1, 1]} : vector<3x128xf32> to vector<1x128xf32>
    %80 = vector.broadcast %78 : vector<32x1xf32> to vector<32x128xf32>
    %81 = vector.broadcast %79 : vector<1x128xf32> to vector<32x128xf32>
    %82 = arith.mulf %80, %81 : vector<32x128xf32>
    %83 = arith.addf %77, %82 : vector<32x128xf32>
    %84 = vector.extract_strided_slice %75 {offsets = [0, 1], sizes = [32, 1], strides = [1, 1]} : vector<32x3xf32> to vector<32x1xf32>
    %85 = vector.extract_strided_slice %72 {offsets = [1, 0], sizes = [1, 128], strides = [1, 1]} : vector<3x128xf32> to vector<1x128xf32>
    %86 = vector.broadcast %84 : vector<32x1xf32> to vector<32x128xf32>
    %87 = vector.broadcast %85 : vector<1x128xf32> to vector<32x128xf32>
    %88 = arith.mulf %86, %87 : vector<32x128xf32>
    %89 = arith.addf %83, %88 : vector<32x128xf32>
    %90 = vector.extract_strided_slice %75 {offsets = [0, 2], sizes = [32, 1], strides = [1, 1]} : vector<32x3xf32> to vector<32x1xf32>
    %91 = vector.extract_strided_slice %72 {offsets = [2, 0], sizes = [1, 128], strides = [1, 1]} : vector<3x128xf32> to vector<1x128xf32>
    %92 = vector.broadcast %90 : vector<32x1xf32> to vector<32x128xf32>
    %93 = vector.broadcast %91 : vector<1x128xf32> to vector<32x128xf32>
    %94 = arith.mulf %92, %93 : vector<32x128xf32>
    %95 = arith.addf %89, %94 : vector<32x128xf32>
    %c0_36 = arith.constant 0 : index
    %c0_37 = arith.constant 0 : index
    %96 = vector.load %arg12[%c0_36, %c0_37] : memref<32x1xf32, #tpu.memory_space<vmem>>, vector<32x1xf32>
    %97 = vector.broadcast %96 : vector<32x1xf32> to vector<32x128xf32>
    %98 = arith.addf %95, %97 : vector<32x128xf32>
    %cst_38 = arith.constant 0.000000e+00 : f32
    %99 = vector.broadcast %cst_38 : f32 to vector<32x128xf32>
    %100 = arith.maximumf %98, %99 : vector<32x128xf32>
    %c0_39 = arith.constant 0 : index
    %c0_40 = arith.constant 0 : index
    %101 = vector.load %arg13[%c0_39, %c0_40] : memref<3x32xf32, #tpu.memory_space<vmem>>, vector<3x32xf32>
    %cst_41 = arith.constant dense<0.000000e+00> : vector<3x128xf32>
    %102 = tpu.matmul %101, %100, %cst_41 {dimension_numbers = #tpu.dot_dimension_numbers<[1], [0], [0], [1], [0, 0, 1, 1], [], []>} : vector<3x32xf32>, vector<32x128xf32>, vector<3x128xf32> -> vector<3x128xf32>
    %c0_42 = arith.constant 0 : index
    %c0_43 = arith.constant 0 : index
    %103 = vector.load %arg14[%c0_42, %c0_43] : memref<3x1xf32, #tpu.memory_space<vmem>>, vector<3x1xf32>
    %104 = vector.broadcast %103 : vector<3x1xf32> to vector<3x128xf32>
    %105 = arith.addf %102, %104 : vector<3x128xf32>
    %c0_44 = arith.constant 0 : index
    %c0_45 = arith.constant 0 : index
    %c0_46 = arith.constant 0 : index
    %106 = vector.load %arg15[%c0_44, %c0_45, %c0_46] : memref<1x6x128xf32, #tpu.memory_space<vmem>>, vector<1x3x128xf32>
    %107 = vector.shape_cast %106 : vector<1x3x128xf32> to vector<3x128xf32>
    %108 = vector.shape_cast %105 : vector<3x128xf32> to vector<1x3x128xf32>
    tpu.vector_store %arg15[%c0_44, %c0_45, %c0_46], %108 {strides = array<i32>} : memref<1x6x128xf32, #tpu.memory_space<vmem>>, vector<1x3x128xf32>,
    %c0_47 = arith.constant 0 : index
    %c3 = arith.constant 3 : index
    %c0_48 = arith.constant 0 : index
    %109 = vector.load %arg15[%c0_47, %c3, %c0_48] : memref<1x6x128xf32, #tpu.memory_space<vmem>>, vector<1x3x128xf32>
    %110 = vector.shape_cast %109 : vector<1x3x128xf32> to vector<3x128xf32>
    %111 = vector.shape_cast %72 : vector<3x128xf32> to vector<1x3x128xf32>
    tpu.vector_store %arg15[%c0_47, %c3, %c0_48], %111 {strides = array<i32>} : memref<1x6x128xf32, #tpu.memory_space<vmem>>, vector<1x3x128xf32>,
    return
  }
  func.func @transform_0(%arg0: i32, %arg1: i32) -> (i32, i32, i32) {
    %c0_i32 = arith.constant 0 : i32
    %c0_i32_0 = arith.constant 0 : i32
    %c0_i32_1 = arith.constant 0 : i32
    return %arg0, %c0_i32, %c0_i32_0 : i32, i32, i32
  }
  func.func @transform_1(%arg0: i32, %arg1: i32) -> (i32, i32, i32) {
    %c0_i32 = arith.constant 0 : i32
    %c0_i32_0 = arith.constant 0 : i32
    %c0_i32_1 = arith.constant 0 : i32
    return %arg0, %c0_i32, %c0_i32_0 : i32, i32, i32
  }
  func.func @transform_2(%arg0: i32, %arg1: i32) -> (i32, i32, i32) {
    %c0_i32 = arith.constant 0 : i32
    %c0_i32_0 = arith.constant 0 : i32
    return %arg0, %c0_i32, %arg1 : i32, i32, i32
  }
  func.func @transform_3(%arg0: i32, %arg1: i32) -> (i32, i32, i32) {
    %c0_i32 = arith.constant 0 : i32
    %c0_i32_0 = arith.constant 0 : i32
    return %arg0, %c0_i32, %arg1 : i32, i32, i32
  }
  func.func @transform_4(%arg0: i32, %arg1: i32) -> (i32, i32) {
    %c0_i32 = arith.constant 0 : i32
    %c0_i32_0 = arith.constant 0 : i32
    %c0_i32_1 = arith.constant 0 : i32
    return %c0_i32, %c0_i32_0 : i32, i32
  }
  func.func @transform_5(%arg0: i32, %arg1: i32) -> (i32, i32) {
    %c0_i32 = arith.constant 0 : i32
    %c0_i32_0 = arith.constant 0 : i32
    %c0_i32_1 = arith.constant 0 : i32
    return %c0_i32, %c0_i32_0 : i32, i32
  }
  func.func @transform_6(%arg0: i32, %arg1: i32) -> (i32, i32) {
    %c0_i32 = arith.constant 0 : i32
    %c0_i32_0 = arith.constant 0 : i32
    %c0_i32_1 = arith.constant 0 : i32
    return %c0_i32, %c0_i32_0 : i32, i32
  }
  func.func @transform_7(%arg0: i32, %arg1: i32) -> (i32, i32) {
    %c0_i32 = arith.constant 0 : i32
    %c0_i32_0 = arith.constant 0 : i32
    %c0_i32_1 = arith.constant 0 : i32
    return %c0_i32, %c0_i32_0 : i32, i32
  }
  func.func @transform_8(%arg0: i32, %arg1: i32) -> (i32, i32) {
    %c0_i32 = arith.constant 0 : i32
    %c0_i32_0 = arith.constant 0 : i32
    %c0_i32_1 = arith.constant 0 : i32
    return %c0_i32, %c0_i32_0 : i32, i32
  }
  func.func @transform_9(%arg0: i32, %arg1: i32) -> (i32, i32) {
    %c0_i32 = arith.constant 0 : i32
    %c0_i32_0 = arith.constant 0 : i32
    %c0_i32_1 = arith.constant 0 : i32
    return %c0_i32, %c0_i32_0 : i32, i32
  }
  func.func @transform_10(%arg0: i32, %arg1: i32) -> (i32, i32) {
    %c0_i32 = arith.constant 0 : i32
    %c0_i32_0 = arith.constant 0 : i32
    %c0_i32_1 = arith.constant 0 : i32
    return %c0_i32, %c0_i32_0 : i32, i32
  }
  func.func @transform_11(%arg0: i32, %arg1: i32) -> (i32, i32) {
    %c0_i32 = arith.constant 0 : i32
    %c0_i32_0 = arith.constant 0 : i32
    %c0_i32_1 = arith.constant 0 : i32
    return %c0_i32, %c0_i32_0 : i32, i32
  }
  func.func @transform_12(%arg0: i32, %arg1: i32) -> (i32, i32) {
    %c0_i32 = arith.constant 0 : i32
    %c0_i32_0 = arith.constant 0 : i32
    %c0_i32_1 = arith.constant 0 : i32
    return %c0_i32, %c0_i32_0 : i32, i32
  }
  func.func @transform_13(%arg0: i32, %arg1: i32) -> (i32, i32, i32) {
    %c0_i32 = arith.constant 0 : i32
    %c0_i32_0 = arith.constant 0 : i32
    return %arg0, %c0_i32, %arg1 : i32, i32, i32
  }
}

</mosaic_0001>

<llo_original>
// kernel: tpu_custom_call.1
$region0: #{tpu_custom_call.1}
  #allocation0 [shape = 'u32[]', space=smem, size = 0x4, offset = 0x4, fixed_abs, tag = 'smem constant byte address 0x4 - core index']
  #allocation1 [shape = 'u32[72,128]{1,0:T(1,128)}', space=vmem, size = 0x9000, scoped, tag = 'internal scratch']
  %s0 = inlined_call_operand.vmem [shape: bf16[2,32,256], index: 0, kind: input, shape index: {}]
  %s1 = inlined_call_operand.vmem [shape: bf16[2,4,256], index: 1, kind: input, shape index: {}]
  %s2 = inlined_call_operand.vmem [shape: f32[2,3,256], index: 2, kind: input, shape index: {}]
  %s3 = inlined_call_operand.vmem [shape: f32[2,32,256], index: 3, kind: input, shape index: {}]
  %s4 = inlined_call_operand.vmem [shape: f32[32,3], index: 4, kind: input, shape index: {}]
  %s5 = inlined_call_operand.vmem [shape: f32[32,1], index: 5, kind: input, shape index: {}]
  %s6 = inlined_call_operand.hbm [shape: f32[32,32], index: 6, kind: input, shape index: {}]
  %s7 = inlined_call_operand.vmem [shape: f32[32,1], index: 7, kind: input, shape index: {}]
  %s8 = inlined_call_operand.hbm [shape: f32[32,32], index: 8, kind: input, shape index: {}]
  %s9 = inlined_call_operand.vmem [shape: f32[32,3], index: 9, kind: input, shape index: {}]
  %s10 = inlined_call_operand.vmem [shape: f32[32,1], index: 10, kind: input, shape index: {}]
  %s11 = inlined_call_operand.vmem [shape: f32[3,32], index: 11, kind: input, shape index: {}]
  %s12 = inlined_call_operand.vmem [shape: f32[3,1], index: 12, kind: input, shape index: {}]
  %s13 = inlined_call_operand.vmem [shape: f32[2,6,256], index: 13, kind: output, shape index: {}]
  %s14 = sld [smem:[#allocation0]]
  $region131: #{tpu_custom_call.1} parent=0
    _
  %s16 = ssub.s32 1, %s14
  %s17 = scalar_select 0, %s16, %s14
  $region1: #{tpu_custom_call.1} parent=0
    #allocation2 [shape = 'u8[32768]{0}', space=vmem, size = 0x8000, scoped, tag = 'input window, operand 3']
    #allocation3 [shape = 'u8[16384]{0}', space=vmem, size = 0x4000, scoped, tag = 'input window, operand 6, single buffered']
    #allocation4 [shape = 's32[2]{0}', space=sflag, size = 0x8, scoped, tag = 'scoped memory for tpu_custom_call.1']
    #allocation5 [shape = 'u8[16384]{0}', space=vmem, size = 0x4000, scoped, tag = 'input window, operand 8, single buffered']
    #allocation6 [shape = 's32[1]{0}', space=sflag, size = 0x4, scoped, tag = 'scoped memory for tpu_custom_call.1']
    %18 = vsyncpa [#allocation4], 0
    %19 = vsyncpa [#allocation6], 0
    loop: start=0, step=1, limit=6
    $region2: #{tpu_custom_call.1} parent=1 // loop_pre_header
      _
    $region3: #{tpu_custom_call.1} parent=1 // loop_header
      %s21 = sphi 0, %s25
      %p22 = scmp.ge.s32.totalorder %s21, 6
      %s28 = sphi 0, %s40
      %s29 = sphi 0, %s36
      %s30 = sphi 0, %s28
      %s31 = sphi 0, %s29
      %s32 = sphi 0, %s30
      %s33 = sphi 0, %s31
      %s43 = sphi 0, %s45
      %s46 = sphi 0, %s43
      %s47 = sphi 0, %s46
      %s63 = sphi 0, %s47
      %s69 = sphi 0, %s71
      %s72 = sphi 0, %s69
      %s73 = sphi 0, %s72
      %s89 = sphi 0, %s73
      %s97 = sphi 0, %s99
      %s100 = sphi 0, %s97
      %s101 = sphi 0, %s100
      %s117 = sphi 0, %s101
      %s125 = sphi 0, %s127
      %s128 = sphi 0, %s125
      %s129 = sphi 0, %s128
      %s145 = sphi 0, %s129
      %s149 = sphi 0, %s149
      %s151 = sphi 0, %s149
      %s152 = sphi 0, %s151
      %s166 = sphi 0, %s152
      %s170 = sphi 0, %s170
      %s172 = sphi 0, %s170
      %s173 = sphi 0, %s172
      %s187 = sphi 0, %s173
      %s191 = sphi 0, %s191
      %s193 = sphi 0, %s191
      %s194 = sphi 0, %s193
      %s208 = sphi 0, %s194
      %s212 = sphi 0, %s212
      %s214 = sphi 0, %s212
      %s215 = sphi 0, %s214
      %s229 = sphi 0, %s215
      %s233 = sphi 0, %s233
      %s235 = sphi 0, %s233
      %s236 = sphi 0, %s235
      %s250 = sphi 0, %s236
      %s254 = sphi 0, %s254
      %s256 = sphi 0, %s254
      %s257 = sphi 0, %s256
      %s271 = sphi 0, %s257
      %s275 = sphi 0, %s275
      %s277 = sphi 0, %s275
      %s278 = sphi 0, %s277
      %s292 = sphi 0, %s278
      %s296 = sphi 0, %s296
      %s298 = sphi 0, %s296
      %s299 = sphi 0, %s298
      %s313 = sphi 0, %s299
      %s317 = sphi 0, %s317
      %s319 = sphi 0, %s317
      %s320 = sphi 0, %s319
      %s334 = sphi 0, %s320
      %s342 = sphi 0, %s344
      %s345 = sphi 0, %s342
      %s346 = sphi 0, %s345
      %s362 = sphi 0, %s346
    $region4: #{tpu_custom_call.1} parent=1 // loop_header_branch
      %24 = sbr.rel (%p22) target = $region8
    $region5: #{tpu_custom_call.1} parent=1 // loop_body
      %s26 = ssub.s32 %s21, 1
      %s27 = ssub.s32 %s21, 2
      %s34 = sadd.s32 1, %s29
      %p35 = scmp.ge.s32.totalorder %s34, 2
      %s36 = scalar_select %p35, 0, %s34
      %s37 = sadd.s32 1, %s28
      %s38 = scalar_select %p35, %s37, %s28
      %p39 = scmp.ge.s32.totalorder %s38, 2
      %s40 = scalar_select %p39, 0, %s38
      %s41 = ssub.s32 %s28, %s40
      %p42 = scmp.eq.s32.totalorder %s41, 0
      %s44 = sadd.s32 %s43, 1
      %s45 = scalar_select %p42, %s43, %s44
      %p48 = pneg %p42
      %p49 = scmp.eq.s32.totalorder %s21, 3
      %p50 = por %p48, %p49
      %p51 = scmp.ne.s32.totalorder %s43, %s46
      %p52 = scmp.eq.s32.totalorder %s21, 0
      %p53 = por %p51, %p52
      %p54 = scmp.ne.s32.totalorder %s43, %s46
      %p55 = scmp.eq.s32.totalorder %s26, 3
      %p56 = por %p54, %p55
      %p57 = scmp.ne.s32.totalorder %s46, %s47
      %p58 = scmp.eq.s32.totalorder %s26, 0
      %p59 = por %p57, %p58
      %p60 = scmp.ne.s32.totalorder %s46, %s47
      %p61 = scmp.eq.s32.totalorder %s27, 3
      %p62 = por %p60, %p61
      %p64 = scmp.ne.s32.totalorder %s47, %s63
      %p65 = scmp.eq.s32.totalorder %s27, 0
      %p66 = por %p64, %p65
      %s67 = ssub.s32 %s28, %s40
      %p68 = scmp.eq.s32.totalorder %s67, 0
      %s70 = sadd.s32 %s69, 1
      %s71 = scalar_select %p68, %s69, %s70
      %p74 = pneg %p68
      %p75 = scmp.eq.s32.totalorder %s21, 3
      %p76 = por %p74, %p75
      %p77 = scmp.ne.s32.totalorder %s69, %s72
      %p78 = scmp.eq.s32.totalorder %s21, 0
      %p79 = por %p77, %p78
      %p80 = scmp.ne.s32.totalorder %s69, %s72
      %p81 = scmp.eq.s32.totalorder %s26, 3
      %p82 = por %p80, %p81
      %p83 = scmp.ne.s32.totalorder %s72, %s73
      %p84 = scmp.eq.s32.totalorder %s26, 0
      %p85 = por %p83, %p84
      %p86 = scmp.ne.s32.totalorder %s72, %s73
      %p87 = scmp.eq.s32.totalorder %s27, 3
      %p88 = por %p86, %p87
      %p90 = scmp.ne.s32.totalorder %s73, %s89
      %p91 = scmp.eq.s32.totalorder %s27, 0
      %p92 = por %p90, %p91
      %s93 = ssub.s32 %s28, %s40
      %s94 = ssub.s32 %s29, %s36
      %s95 = sor.u32 %s93, %s94
      %p96 = scmp.eq.s32.totalorder %s95, 0
      %s98 = sadd.s32 %s97, 1
      %s99 = scalar_select %p96, %s97, %s98
      %p102 = pneg %p96
      %p103 = scmp.eq.s32.totalorder %s21, 3
      %p104 = por %p102, %p103
      %p105 = scmp.ne.s32.totalorder %s97, %s100
      %p106 = scmp.eq.s32.totalorder %s21, 0
      %p107 = por %p105, %p106
      %p108 = scmp.ne.s32.totalorder %s97, %s100
      %p109 = scmp.eq.s32.totalorder %s26, 3
      %p110 = por %p108, %p109
      %p111 = scmp.ne.s32.totalorder %s100, %s101
      %p112 = scmp.eq.s32.totalorder %s26, 0
      %p113 = por %p111, %p112
      %p114 = scmp.ne.s32.totalorder %s100, %s101
      %p115 = scmp.eq.s32.totalorder %s27, 3
      %p116 = por %p114, %p115
      %p118 = scmp.ne.s32.totalorder %s101, %s117
      %p119 = scmp.eq.s32.totalorder %s27, 0
      %p120 = por %p118, %p119
      %s121 = ssub.s32 %s28, %s40
      %s122 = ssub.s32 %s29, %s36
      %s123 = sor.u32 %s121, %s122
      %p124 = scmp.eq.s32.totalorder %s123, 0
      %s126 = sadd.s32 %s125, 1
      %s127 = scalar_select %p124, %s125, %s126
      %p130 = pneg %p124
      %p131 = scmp.eq.s32.totalorder %s21, 3
      %p132 = por %p130, %p131
      %p133 = scmp.ne.s32.totalorder %s125, %s128
      %p134 = scmp.eq.s32.totalorder %s21, 0
      %p135 = por %p133, %p134
      %p136 = scmp.ne.s32.totalorder %s125, %s128
      %p137 = scmp.eq.s32.totalorder %s26, 3
      %p138 = por %p136, %p137
      %p139 = scmp.ne.s32.totalorder %s128, %s129
      %p140 = scmp.eq.s32.totalorder %s26, 0
      %p141 = por %p139, %p140
      %p142 = scmp.ne.s32.totalorder %s128, %s129
      %p143 = scmp.eq.s32.totalorder %s27, 3
      %p144 = por %p142, %p143
      %p146 = scmp.ne.s32.totalorder %s129, %s145
      %p147 = scmp.eq.s32.totalorder %s27, 0
      %p148 = por %p146, %p147
      %s150 = sadd.s32 %s149, 1
      %p153 = scmp.eq.s32.totalorder %s21, 3
      %p154 = scmp.ne.s32.totalorder %s149, %s151
      %p155 = scmp.eq.s32.totalorder %s21, 0
      %p156 = por %p154, %p155
      %p157 = scmp.ne.s32.totalorder %s149, %s151
      %p158 = scmp.eq.s32.totalorder %s26, 3
      %p159 = por %p157, %p158
      %p160 = scmp.ne.s32.totalorder %s151, %s152
      %p161 = scmp.eq.s32.totalorder %s26, 0
      %p162 = por %p160, %p161
      %p163 = scmp.ne.s32.totalorder %s151, %s152
      %p164 = scmp.eq.s32.totalorder %s27, 3
      %p165 = por %p163, %p164
      %p167 = scmp.ne.s32.totalorder %s152, %s166
      %p168 = scmp.eq.s32.totalorder %s27, 0
      %p169 = por %p167, %p168
      %s171 = sadd.s32 %s170, 1
      %p174 = scmp.eq.s32.totalorder %s21, 3
      %p175 = scmp.ne.s32.totalorder %s170, %s172
      %p176 = scmp.eq.s32.totalorder %s21, 0
      %p177 = por %p175, %p176
      %p178 = scmp.ne.s32.totalorder %s170, %s172
      %p179 = scmp.eq.s32.totalorder %s26, 3
      %p180 = por %p178, %p179
      %p181 = scmp.ne.s32.totalorder %s172, %s173
      %p182 = scmp.eq.s32.totalorder %s26, 0
      %p183 = por %p181, %p182
      %p184 = scmp.ne.s32.totalorder %s172, %s173
      %p185 = scmp.eq.s32.totalorder %s27, 3
      %p186 = por %p184, %p185
      %p188 = scmp.ne.s32.totalorder %s173, %s187
      %p189 = scmp.eq.s32.totalorder %s27, 0
      %p190 = por %p188, %p189
      %s192 = sadd.s32 %s191, 1
      %p195 = scmp.eq.s32.totalorder %s21, 3
      %p196 = scmp.ne.s32.totalorder %s191, %s193
      %p197 = scmp.eq.s32.totalorder %s21, 0
      %p198 = por %p196, %p197
      %p199 = scmp.ne.s32.totalorder %s191, %s193
      %p200 = scmp.eq.s32.totalorder %s26, 3
      %p201 = por %p199, %p200
      %p202 = scmp.ne.s32.totalorder %s193, %s194
      %p203 = scmp.eq.s32.totalorder %s26, 0
      %p204 = por %p202, %p203
      %p205 = scmp.ne.s32.totalorder %s193, %s194
      %p206 = scmp.eq.s32.totalorder %s27, 3
      %p207 = por %p205, %p206
      %p209 = scmp.ne.s32.totalorder %s194, %s208
      %p210 = scmp.eq.s32.totalorder %s27, 0
      %p211 = por %p209, %p210
      %s213 = sadd.s32 %s212, 1
      %p216 = scmp.eq.s32.totalorder %s21, 3
      %p217 = scmp.ne.s32.totalorder %s212, %s214
      %p218 = scmp.eq.s32.totalorder %s21, 0
      %p219 = por %p217, %p218
      %p220 = scmp.ne.s32.totalorder %s212, %s214
      %p221 = scmp.eq.s32.totalorder %s26, 3
      %p222 = por %p220, %p221
      %p223 = scmp.ne.s32.totalorder %s214, %s215
      %p224 = scmp.eq.s32.totalorder %s26, 0
      %p225 = por %p223, %p224
      %p226 = scmp.ne.s32.totalorder %s214, %s215
      %p227 = scmp.eq.s32.totalorder %s27, 3
      %p228 = por %p226, %p227
      %p230 = scmp.ne.s32.totalorder %s215, %s229
      %p231 = scmp.eq.s32.totalorder %s27, 0
      %p232 = por %p230, %p231
      %s234 = sadd.s32 %s233, 1
      %p237 = scmp.eq.s32.totalorder %s21, 3
      %p238 = scmp.ne.s32.totalorder %s233, %s235
      %p239 = scmp.eq.s32.totalorder %s21, 0
      %p240 = por %p238, %p239
      %p241 = scmp.ne.s32.totalorder %s233, %s235
      %p242 = scmp.eq.s32.totalorder %s26, 3
      %p243 = por %p241, %p242
      %p244 = scmp.ne.s32.totalorder %s235, %s236
      %p245 = scmp.eq.s32.totalorder %s26, 0
      %p246 = por %p244, %p245
      %p247 = scmp.ne.s32.totalorder %s235, %s236
      %p248 = scmp.eq.s32.totalorder %s27, 3
      %p249 = por %p247, %p248
      %p251 = scmp.ne.s32.totalorder %s236, %s250
      %p252 = scmp.eq.s32.totalorder %s27, 0
      %p253 = por %p251, %p252
      %s255 = sadd.s32 %s254, 1
      %p258 = scmp.eq.s32.totalorder %s21, 3
      %p259 = scmp.ne.s32.totalorder %s254, %s256
      %p260 = scmp.eq.s32.totalorder %s21, 0
      %p261 = por %p259, %p260
      %p262 = scmp.ne.s32.totalorder %s254, %s256
      %p263 = scmp.eq.s32.totalorder %s26, 3
      %p264 = por %p262, %p263
      %p265 = scmp.ne.s32.totalorder %s256, %s257
      %p266 = scmp.eq.s32.totalorder %s26, 0
      %p267 = por %p265, %p266
      %p268 = scmp.ne.s32.totalorder %s256, %s257
      %p269 = scmp.eq.s32.totalorder %s27, 3
      %p270 = por %p268, %p269
      %p272 = scmp.ne.s32.totalorder %s257, %s271
      %p273 = scmp.eq.s32.totalorder %s27, 0
      %p274 = por %p272, %p273
      %s276 = sadd.s32 %s275, 1
      %p279 = scmp.eq.s32.totalorder %s21, 3
      %p280 = scmp.ne.s32.totalorder %s275, %s277
      %p281 = scmp.eq.s32.totalorder %s21, 0
      %p282 = por %p280, %p281
      %p283 = scmp.ne.s32.totalorder %s275, %s277
      %p284 = scmp.eq.s32.totalorder %s26, 3
      %p285 = por %p283, %p284
      %p286 = scmp.ne.s32.totalorder %s277, %s278
      %p287 = scmp.eq.s32.totalorder %s26, 0
      %p288 = por %p286, %p287
      %p289 = scmp.ne.s32.totalorder %s277, %s278
      %p290 = scmp.eq.s32.totalorder %s27, 3
      %p291 = por %p289, %p290
      %p293 = scmp.ne.s32.totalorder %s278, %s292
      %p294 = scmp.eq.s32.totalorder %s27, 0
      %p295 = por %p293, %p294
      %s297 = sadd.s32 %s296, 1
      %p300 = scmp.eq.s32.totalorder %s21, 3
      %p301 = scmp.ne.s32.totalorder %s296, %s298
      %p302 = scmp.eq.s32.totalorder %s21, 0
      %p303 = por %p301, %p302
      %p304 = scmp.ne.s32.totalorder %s296, %s298
      %p305 = scmp.eq.s32.totalorder %s26, 3
      %p306 = por %p304, %p305
      %p307 = scmp.ne.s32.totalorder %s298, %s299
      %p308 = scmp.eq.s32.totalorder %s26, 0
      %p309 = por %p307, %p308
      %p310 = scmp.ne.s32.totalorder %s298, %s299
      %p311 = scmp.eq.s32.totalorder %s27, 3
      %p312 = por %p310, %p311
      %p314 = scmp.ne.s32.totalorder %s299, %s313
      %p315 = scmp.eq.s32.totalorder %s27, 0
      %p316 = por %p314, %p315
      %s318 = sadd.s32 %s317, 1
      %p321 = scmp.eq.s32.totalorder %s21, 3
      %p322 = scmp.ne.s32.totalorder %s317, %s319
      %p323 = scmp.eq.s32.totalorder %s21, 0
      %p324 = por %p322, %p323
      %p325 = scmp.ne.s32.totalorder %s317, %s319
      %p326 = scmp.eq.s32.totalorder %s26, 3
      %p327 = por %p325, %p326
      %p328 = scmp.ne.s32.totalorder %s319, %s320
      %p329 = scmp.eq.s32.totalorder %s26, 0
      %p330 = por %p328, %p329
      %p331 = scmp.ne.s32.totalorder %s319, %s320
      %p332 = scmp.eq.s32.totalorder %s27, 3
      %p333 = por %p331, %p332
      %p335 = scmp.ne.s32.totalorder %s320, %s334
      %p336 = scmp.eq.s32.totalorder %s27, 0
      %p337 = por %p335, %p336
      %s338 = ssub.s32 %s28, %s40
      %s339 = ssub.s32 %s29, %s36
      %s340 = sor.u32 %s338, %s339
      %p341 = scmp.eq.s32.totalorder %s340, 0
      %s343 = sadd.s32 %s342, 1
      %s344 = scalar_select %p341, %s342, %s343
      %p347 = pneg %p341
      %p348 = scmp.eq.s32.totalorder %s21, 3
      %p349 = por %p347, %p348
      %p350 = scmp.ne.s32.totalorder %s342, %s345
      %p351 = scmp.eq.s32.totalorder %s21, 0
      %p352 = por %p350, %p351
      %p353 = scmp.ne.s32.totalorder %s342, %s345
      %p354 = scmp.eq.s32.totalorder %s26, 3
      %p355 = por %p353, %p354
      %p356 = scmp.ne.s32.totalorder %s345, %s346
      %p357 = scmp.eq.s32.totalorder %s26, 0
      %p358 = por %p356, %p357
      %p359 = scmp.ne.s32.totalorder %s345, %s346
      %p360 = scmp.eq.s32.totalorder %s27, 3
      %p361 = por %p359, %p360
      %p363 = scmp.ne.s32.totalorder %s346, %s362
      %p364 = scmp.eq.s32.totalorder %s27, 0
      %p365 = por %p363, %p364
      %p366 = scmp.le.s32.totalorder 1, %s21
      %p367 = scmp.lt.s32.totalorder %s21, 5
      %p368 = pnand %p366, %p367
      %p369 = pneg %p368
      // Predicated region
      $region9: #{tpu_custom_call.1} parent=5 // pred_check
        _
      $region10: #{tpu_custom_call.1} parent=5 // pred_check_branch
        %371 = sbr.rel (%p368) target = $region12
      $region11: #{tpu_custom_call.1} parent=5 // pred_region
        %s372 = ssub.s32 %s21, 1
        // Predicated region
        $region13: #{tpu_custom_call.1} parent=11 // pred_check
          %p373 = pneg %p162
        $region14: #{tpu_custom_call.1} parent=11 // pred_check_branch
          %375 = sbr.rel (%p373) target = $region16
        $region15: #{tpu_custom_call.1} parent=11 // pred_region
          _
        $region16: #{tpu_custom_call.1} parent=11 // pred_fallthru
          _
        // Predicated region
        $region17: #{tpu_custom_call.1} parent=11 // pred_check
          %p376 = pneg %p183
        $region18: #{tpu_custom_call.1} parent=11 // pred_check_branch
          %378 = sbr.rel (%p376) target = $region20
        $region19: #{tpu_custom_call.1} parent=11 // pred_region
          _
        $region20: #{tpu_custom_call.1} parent=11 // pred_fallthru
          _
        // Predicated region
        $region21: #{tpu_custom_call.1} parent=11 // pred_check
          %p379 = pneg %p204
        $region22: #{tpu_custom_call.1} parent=11 // pred_check_branch
          %381 = sbr.rel (%p379) target = $region24
        $region23: #{tpu_custom_call.1} parent=11 // pred_region
          %383 = vsyncadd [#allocation4], 0
          %s384 = sshll.u32 %s6, 4
          %s385 = int_to_ptr.hbm [resolvable:$true] %s384
          %s386 = sshll.u32 [#allocation3], 4
          %s387 = int_to_ptr.vmem [resolvable:$true] %s386
          %392 = dma.hbm_to_vmem [thread:$0]  %s385, 512, %s387, [#allocation4], 128, 128, 8
        $region24: #{tpu_custom_call.1} parent=11 // pred_fallthru
          _
        // Predicated region
        $region25: #{tpu_custom_call.1} parent=11 // pred_check
          %p393 = pneg %p225
        $region26: #{tpu_custom_call.1} parent=11 // pred_check_branch
          %395 = sbr.rel (%p393) target = $region28
        $region27: #{tpu_custom_call.1} parent=11 // pred_region
          _
        $region28: #{tpu_custom_call.1} parent=11 // pred_fallthru
          _
        // Predicated region
        $region29: #{tpu_custom_call.1} parent=11 // pred_check
          %p396 = pneg %p246
        $region30: #{tpu_custom_call.1} parent=11 // pred_check_branch
          %398 = sbr.rel (%p396) target = $region32
        $region31: #{tpu_custom_call.1} parent=11 // pred_region
          %400 = vsyncadd [#allocation6], 0
          %s401 = sshll.u32 %s8, 4
          %s402 = int_to_ptr.hbm [resolvable:$true] %s401
          %s403 = sshll.u32 [#allocation5], 4
          %s404 = int_to_ptr.vmem [resolvable:$true] %s403
          %409 = dma.hbm_to_vmem [thread:$0]  %s402, 512, %s404, [#allocation6], 128, 128, 8
        $region32: #{tpu_custom_call.1} parent=11 // pred_fallthru
          _
        // Predicated region
        $region33: #{tpu_custom_call.1} parent=11 // pred_check
          %p410 = pneg %p267
        $region34: #{tpu_custom_call.1} parent=11 // pred_check_branch
          %412 = sbr.rel (%p410) target = $region36
        $region35: #{tpu_custom_call.1} parent=11 // pred_region
          _
        $region36: #{tpu_custom_call.1} parent=11 // pred_fallthru
          _
        // Predicated region
        $region37: #{tpu_custom_call.1} parent=11 // pred_check
          %p413 = pneg %p288
        $region38: #{tpu_custom_call.1} parent=11 // pred_check_branch
          %415 = sbr.rel (%p413) target = $region40
        $region39: #{tpu_custom_call.1} parent=11 // pred_region
          _
        $region40: #{tpu_custom_call.1} parent=11 // pred_fallthru
          _
        // Predicated region
        $region41: #{tpu_custom_call.1} parent=11 // pred_check
          %p416 = pneg %p309
        $region42: #{tpu_custom_call.1} parent=11 // pred_check_branch
          %418 = sbr.rel (%p416) target = $region44
        $region43: #{tpu_custom_call.1} parent=11 // pred_region
          _
        $region44: #{tpu_custom_call.1} parent=11 // pred_fallthru
          _
        // Predicated region
        $region45: #{tpu_custom_call.1} parent=11 // pred_check
          %p419 = pneg %p330
        $region46: #{tpu_custom_call.1} parent=11 // pred_check_branch
          %421 = sbr.rel (%p419) target = $region48
        $region47: #{tpu_custom_call.1} parent=11 // pred_region
          _
        $region48: #{tpu_custom_call.1} parent=11 // pred_fallthru
          _
      $region12: #{tpu_custom_call.1} parent=5 // pred_fallthru
        _
      %p422 = scmp.lt.s32.totalorder %s21, 4
      // Predicated region
      $region49: #{tpu_custom_call.1} parent=5 // pred_check
        %p423 = pneg %p422
      $region50: #{tpu_custom_call.1} parent=5 // pred_check_branch
        %425 = sbr.rel (%p423) target = $region52
      $region51: #{tpu_custom_call.1} parent=5 // pred_region
        // Predicated region
        $region53: #{tpu_custom_call.1} parent=51 // pred_check
          %p426 = pneg %p53
        $region54: #{tpu_custom_call.1} parent=51 // pred_check_branch
          %428 = sbr.rel (%p426) target = $region56
        $region55: #{tpu_custom_call.1} parent=51 // pred_region
          %p429 = scmp.lt.s32.totalorder %s28, 1
          %s430 = scalar_select %p429, %s28, 1
          %s431 = smul.addr %s430, 8
          %s432 = smul.addr %s431, 4
          %s433 = scalar_lea.vmem %s0, %s432
        $region56: #{tpu_custom_call.1} parent=51 // pred_fallthru
          _
        // Predicated region
        $region57: #{tpu_custom_call.1} parent=51 // pred_check
          %p434 = pneg %p79
        $region58: #{tpu_custom_call.1} parent=51 // pred_check_branch
          %436 = sbr.rel (%p434) target = $region60
        $region59: #{tpu_custom_call.1} parent=51 // pred_region
          %p437 = scmp.lt.s32.totalorder %s28, 1
          %s438 = scalar_select %p437, %s28, 1
          %s439 = smul.addr %s438, 2
          %s440 = smul.addr %s439, 2
          %s441 = scalar_lea.vmem %s1, %s440
        $region60: #{tpu_custom_call.1} parent=51 // pred_fallthru
          _
        // Predicated region
        $region61: #{tpu_custom_call.1} parent=51 // pred_check
          %p442 = pneg %p107
        $region62: #{tpu_custom_call.1} parent=51 // pred_check_branch
          %444 = sbr.rel (%p442) target = $region64
        $region63: #{tpu_custom_call.1} parent=51 // pred_region
          %p445 = scmp.lt.s32.totalorder %s28, 1
          %s446 = scalar_select %p445, %s28, 1
          %p447 = scmp.lt.s32.totalorder %s29, 1
          %s448 = scalar_select %p447, %s29, 1
          %s449 = smul.addr %s446, 2
          %s450 = sadd.s32 %s448, %s449
          %s451 = smul.addr %s450, 4
          %s452 = scalar_lea.vmem %s2, %s451
        $region64: #{tpu_custom_call.1} parent=51 // pred_fallthru
          _
        // Predicated region
        $region65: #{tpu_custom_call.1} parent=51 // pred_check
          %p453 = pneg %p135
        $region66: #{tpu_custom_call.1} parent=51 // pred_check_branch
          %455 = sbr.rel (%p453) target = $region68
        $region67: #{tpu_custom_call.1} parent=51 // pred_region
          %s456 = sand.u32 %s125, 1
          %s457 = sand.u32 %s125, 1
          %s458 = smul.addr %s457, 32
          %s459 = scalar_lea.vmem [#allocation2], %s458
          %s460 = smul.addr %s28, 8
          %s461 = sadd.s32 %s29, %s460
          %s462 = smul.addr %s461, 8
          %s463 = scalar_lea.vmem %s3, %s462
          // Predicated region
          $region69: #{tpu_custom_call.1} parent=67 // pred_check
            _
          $region70: #{tpu_custom_call.1} parent=67 // pred_check_branch
            %465 = sbr.rel (0) target = $region72
          $region71: #{tpu_custom_call.1} parent=67 // pred_region
            // Predicated region
            $region73: #{tpu_custom_call.1} parent=71 // pred_check
              _
            $region74: #{tpu_custom_call.1} parent=71 // pred_check_branch
              %467 = sbr.rel (0) target = $region76
            $region75: #{tpu_custom_call.1} parent=71 // pred_region
              // Predicated region
              $region88: #{tpu_custom_call.1} parent=75 // pred_check
                _
              $region89: #{tpu_custom_call.1} parent=75 // pred_check_branch
                %489 = sbr.rel (0) target = $region91
              $region90: #{tpu_custom_call.1} parent=75 // pred_region
                loop: start=0, step=1, limit=1
                $region92: #{tpu_custom_call.1} parent=90 // loop_pre_header
                  _
                $region93: #{tpu_custom_call.1} parent=90 // loop_header
                  %s491 = sphi 0, %s495
                  %p492 = scmp.ge.s32.totalorder %s491, 1
                  %s496 = sphi %s463, %s463
                  %s497 = sphi %s459, %s459
                $region94: #{tpu_custom_call.1} parent=90 // loop_header_branch
                  %494 = sbr.rel (%p492) target = $region98
                $region95: #{tpu_custom_call.1} parent=90 // loop_body
                  %v498 = vld [vmem:[%s496] sm:$0xff]
                  %499 = vst [vmem:[%s497] sm:$0xff] %v498
                  %v500 = vld [vmem:[%s496 + $0x10] sm:$0xff]
                  %501 = vst [vmem:[%s497 + $0x8] sm:$0xff] %v500
                  %v502 = vld [vmem:[%s496 + $0x20] sm:$0xff]
                  %503 = vst [vmem:[%s497 + $0x10] sm:$0xff] %v502
                  %v504 = vld [vmem:[%s496 + $0x30] sm:$0xff]
                  %505 = vst [vmem:[%s497 + $0x18] sm:$0xff] %v504
                $region96: #{tpu_custom_call.1} parent=90 // loop_footer
                  %s495 = sadd.s32 1, %s491
                $region97: #{tpu_custom_call.1} parent=90 // loop_footer_branch
                  %490 = sbr.rel target = $region93
                $region98: #{tpu_custom_call.1} parent=90 // loop_exit
                  _
              $region91: #{tpu_custom_call.1} parent=75 // pred_fallthru
                _
              // Predicated region
              $region99: #{tpu_custom_call.1} parent=75 // pred_check
                _
              $region100: #{tpu_custom_call.1} parent=75 // pred_check_branch
                %507 = sbr.rel target = $region102
              $region101: #{tpu_custom_call.1} parent=75 // pred_region
                _
              $region102: #{tpu_custom_call.1} parent=75 // pred_fallthru
                _
            $region76: #{tpu_custom_call.1} parent=71 // pred_fallthru
              _
            // Predicated region
            $region77: #{tpu_custom_call.1} parent=71 // pred_check
              _
            $region78: #{tpu_custom_call.1} parent=71 // pred_check_branch
              %469 = sbr.rel target = $region80
            $region79: #{tpu_custom_call.1} parent=71 // pred_region
              %s471 = ssub.s32 256, 1
              loop: start=0, step=1, limit=1
              $region81: #{tpu_custom_call.1} parent=79 // loop_pre_header
                _
              $region82: #{tpu_custom_call.1} parent=79 // loop_header
                %s473 = sphi 0, %s477
                %p474 = scmp.ge.s32.totalorder %s473, 1
                %s478 = sphi %s463, %s463
                %s479 = sphi %s459, %s459
              $region83: #{tpu_custom_call.1} parent=79 // loop_header_branch
                %476 = sbr.rel (%p474) target = $region87
              $region84: #{tpu_custom_call.1} parent=79 // loop_body
                %v480 = vld [vmem:[%s478] sm:%s471]
                %481 = vst [vmem:[%s479] sm:%s471] %v480
                %v482 = vld [vmem:[%s478 + $0x10] sm:%s471]
                %483 = vst [vmem:[%s479 + $0x8] sm:%s471] %v482
                %v484 = vld [vmem:[%s478 + $0x20] sm:%s471]
                %485 = vst [vmem:[%s479 + $0x10] sm:%s471] %v484
                %v486 = vld [vmem:[%s478 + $0x30] sm:%s471]
                %487 = vst [vmem:[%s479 + $0x18] sm:%s471] %v486
              $region85: #{tpu_custom_call.1} parent=79 // loop_footer
                %s477 = sadd.s32 1, %s473
              $region86: #{tpu_custom_call.1} parent=79 // loop_footer_branch
                %472 = sbr.rel target = $region82
              $region87: #{tpu_custom_call.1} parent=79 // loop_exit
                _
            $region80: #{tpu_custom_call.1} parent=71 // pred_fallthru
              _
          $region72: #{tpu_custom_call.1} parent=67 // pred_fallthru
            _
          %508 = vnop
        $region68: #{tpu_custom_call.1} parent=51 // pred_fallthru
          _
      $region52: #{tpu_custom_call.1} parent=5 // pred_fallthru
        _
      %p509 = scmp.le.s32.totalorder 1, %s21
      %p510 = scmp.lt.s32.totalorder %s21, 5
      %p511 = pnand %p509, %p510
      %p512 = pneg %p511
      // Predicated region
      $region103: #{tpu_custom_call.1} parent=5 // pred_check
        _
      $region104: #{tpu_custom_call.1} parent=5 // pred_check_branch
        %514 = sbr.rel (%p511) target = $region106
      $region105: #{tpu_custom_call.1} parent=5 // pred_region
        %s515 = ssub.s32 %s21, 1
        %s516 = sand.u32 %s128, 1
        %s517 = sand.u32 %s128, 1
        %s518 = smul.addr %s517, 32
        %s519 = scalar_lea.vmem [#allocation2], %s518
        // Predicated region
        $region107: #{tpu_custom_call.1} parent=105 // pred_check
          %p520 = pneg %p141
        $region108: #{tpu_custom_call.1} parent=105 // pred_check_branch
          %522 = sbr.rel (%p520) target = $region110
        $region109: #{tpu_custom_call.1} parent=105 // pred_region
          _
        $region110: #{tpu_custom_call.1} parent=105 // pred_fallthru
          _
        // Predicated region
        $region111: #{tpu_custom_call.1} parent=105 // pred_check
          %p523 = pneg %p204
        $region112: #{tpu_custom_call.1} parent=105 // pred_check_branch
          %525 = sbr.rel (%p523) target = $region114
        $region113: #{tpu_custom_call.1} parent=105 // pred_region
          %527 = dma.done [#allocation4], 512
        $region114: #{tpu_custom_call.1} parent=105 // pred_fallthru
          _
        // Predicated region
        $region115: #{tpu_custom_call.1} parent=105 // pred_check
          %p528 = pneg %p246
        $region116: #{tpu_custom_call.1} parent=105 // pred_check_branch
          %530 = sbr.rel (%p528) target = $region118
        $region117: #{tpu_custom_call.1} parent=105 // pred_region
          %532 = dma.done [#allocation6], 512
        $region118: #{tpu_custom_call.1} parent=105 // pred_fallthru
          _
        %p533 = scmp.lt.s32.totalorder %s30, 1
        %s534 = scalar_select %p533, %s30, 1
        %s535 = smul.addr %s534, 8
        %s536 = smul.addr %s535, 4
        %s537 = scalar_lea.vmem %s0, %s536
        %p538 = pneg %p59
        %p539 = pneg %p56
        %p540 = scmp.lt.s32.totalorder %s30, 1
        %s541 = scalar_select %p540, %s30, 1
        %s542 = smul.addr %s541, 2
        %s543 = smul.addr %s542, 2
        %s544 = scalar_lea.vmem %s1, %s543
        %p545 = pneg %p85
        %p546 = pneg %p82
        %p547 = scmp.lt.s32.totalorder %s30, 1
        %s548 = scalar_select %p547, %s30, 1
        %p549 = scmp.lt.s32.totalorder %s31, 1
        %s550 = scalar_select %p549, %s31, 1
        %s551 = smul.addr %s548, 2
        %s552 = sadd.s32 %s550, %s551
        %s553 = smul.addr %s552, 4
        %s554 = scalar_lea.vmem %s2, %s553
        %p555 = pneg %p113
        %p556 = pneg %p110
        %s557 = sand.u32 %s128, 1
        %s558 = sand.u32 %s128, 1
        %s559 = smul.addr %s558, 32
        %s560 = scalar_lea.vmem [#allocation2], %s559
        %p561 = pneg %p141
        %p562 = pneg %p138
        %p563 = pneg %p162
        %p564 = pneg %p159
        %p565 = pneg %p183
        %p566 = pneg %p180
        %p567 = pneg %p204
        %p568 = pneg %p201
        %p569 = pneg %p225
        %p570 = pneg %p222
        %p571 = pneg %p246
        %p572 = pneg %p243
        %p573 = pneg %p267
        %p574 = pneg %p264
        %p575 = pneg %p288
        %p576 = pneg %p285
        %p577 = pneg %p309
        %p578 = pneg %p306
        %p579 = pneg %p330
        %p580 = pneg %p327
        %p581 = pneg %p358
        %p582 = pneg %p355
        %p583 = scmp.lt.s32.totalorder %s30, 1
        %s584 = scalar_select %p583, %s30, 1
        %p585 = scmp.lt.s32.totalorder %s31, 1
        %s586 = scalar_select %p585, %s31, 1
        %s587 = smul.addr %s584, 2
        %s588 = sadd.s32 %s586, %s587
        %s589 = smul.addr %s588, 8
        %s590 = scalar_lea.vmem %s13, %s589
        %p591 = scmp.lt.s32.totalorder %s30, 1
        %s592 = scalar_select %p591, %s30, 1
        %s593 = smul.addr %s592, 8
        %s594 = smul.addr %s593, 4
        %s595 = scalar_lea.vmem %s0, %s594
        %p596 = scmp.lt.s32.totalorder %s30, 1
        %s597 = scalar_select %p596, %s30, 1
        %s598 = smul.addr %s597, 2
        %s599 = smul.addr %s598, 2
        %s600 = scalar_lea.vmem %s1, %s599
        %p601 = scmp.lt.s32.totalorder %s30, 1
        %s602 = scalar_select %p601, %s30, 1
        %p603 = scmp.lt.s32.totalorder %s31, 1
        %s604 = scalar_select %p603, %s31, 1
        %s605 = smul.addr %s602, 2
        %s606 = sadd.s32 %s604, %s605
        %s607 = smul.addr %s606, 4
        %s608 = scalar_lea.vmem %s2, %s607
        %p609 = scmp.lt.s32.totalorder %s30, 1
        %s610 = scalar_select %p609, %s30, 1
        %p611 = scmp.lt.s32.totalorder %s31, 1
        %s612 = scalar_select %p611, %s31, 1
        %s613 = smul.addr %s610, 2
        %s614 = sadd.s32 %s612, %s613
        %s615 = smul.addr %s614, 8
        %s616 = scalar_lea.vmem %s13, %s615
        %v618 = vld [vmem:[%s4] sm:$0xff]
        %v619 = vld [vmem:[%s4 + $0x8] sm:$0xff]
        %v620 = vld [vmem:[%s4 + $0x10] sm:$0xff]
        %v621 = vld [vmem:[%s4 + $0x18] sm:$0xff]
        %v622 = vld [vmem:[%s608] sm:$0x7]
        %624 = vset.pattern.permute.xlu0 0
        %625 = vperm.xlu0 %624, %v618
        %v626 = vpop.permute.xlu0 %625
        %629 = vset.pattern.permute.xlu0 0
        %630 = vperm.xlu0 %629, %v619
        %v631 = vpop.permute.xlu0 %630
        %634 = vset.pattern.permute.xlu0 0
        %635 = vperm.xlu0 %634, %v620
        %v636 = vpop.permute.xlu0 %635
        %639 = vset.pattern.permute.xlu0 0
        %640 = vperm.xlu0 %639, %v621
        %v641 = vpop.permute.xlu0 %640
        %v643 = vperm.slane %v622, 0
        %v644 = vmul.f32 %v626, %v643
        %v645 = vmul.f32 %v631, %v643
        %v646 = vmul.f32 %v636, %v643
        %v647 = vmul.f32 %v641, %v643
        %648 = vset.pattern.permute.xlu0 1
        %649 = vperm.xlu0 %648, %v618
        %v650 = vpop.permute.xlu0 %649
        %652 = vset.pattern.permute.xlu0 1
        %653 = vperm.xlu0 %652, %v619
        %v654 = vpop.permute.xlu0 %653
        %656 = vset.pattern.permute.xlu0 1
        %657 = vperm.xlu0 %656, %v620
        %v658 = vpop.permute.xlu0 %657
        %660 = vset.pattern.permute.xlu0 1
        %661 = vperm.xlu0 %660, %v621
        %v662 = vpop.permute.xlu0 %661
        %v664 = vperm.slane %v622, 1
        %v665 = vmul.f32 %v650, %v664
        %v666 = vmul.f32 %v654, %v664
        %v667 = vmul.f32 %v658, %v664
        %v668 = vmul.f32 %v662, %v664
        %v669 = vadd.f32 %v644, %v665
        %v670 = vadd.f32 %v645, %v666
        %v671 = vadd.f32 %v646, %v667
        %v672 = vadd.f32 %v647, %v668
        %673 = vset.pattern.permute.xlu0 2
        %674 = vperm.xlu0 %673, %v618
        %v675 = vpop.permute.xlu0 %674
        %677 = vset.pattern.permute.xlu0 2
        %678 = vperm.xlu0 %677, %v619
        %v679 = vpop.permute.xlu0 %678
        %681 = vset.pattern.permute.xlu0 2
        %682 = vperm.xlu0 %681, %v620
        %v683 = vpop.permute.xlu0 %682
        %685 = vset.pattern.permute.xlu0 2
        %686 = vperm.xlu0 %685, %v621
        %v687 = vpop.permute.xlu0 %686
        %v689 = vperm.slane %v622, 2
        %v690 = vmul.f32 %v675, %v689
        %v691 = vmul.f32 %v679, %v689
        %v692 = vmul.f32 %v683, %v689
        %v693 = vmul.f32 %v687, %v689
        %v694 = vadd.f32 %v669, %v690
        %v695 = vadd.f32 %v670, %v691
        %v696 = vadd.f32 %v671, %v692
        %v697 = vadd.f32 %v672, %v693
        %v698 = vld [vmem:[%s5] sm:$0xff]
        %v699 = vld [vmem:[%s5 + $0x8] sm:$0xff]
        %v700 = vld [vmem:[%s5 + $0x10] sm:$0xff]
        %v701 = vld [vmem:[%s5 + $0x18] sm:$0xff]
        %703 = vset.pattern.permute.xlu0 0
        %704 = vperm.xlu0 %703, %v698
        %v705 = vpop.permute.xlu0 %704
        %708 = vset.pattern.permute.xlu0 0
        %709 = vperm.xlu0 %708, %v699
        %v710 = vpop.permute.xlu0 %709
        %713 = vset.pattern.permute.xlu0 0
        %714 = vperm.xlu0 %713, %v700
        %v715 = vpop.permute.xlu0 %714
        %718 = vset.pattern.permute.xlu0 0
        %719 = vperm.xlu0 %718, %v701
        %v720 = vpop.permute.xlu0 %719
        %v722 = vadd.f32 %v694, %v705
        %v723 = vadd.f32 %v695, %v710
        %v724 = vadd.f32 %v696, %v715
        %v725 = vadd.f32 %v697, %v720
        %v726 = vmax.f32 %v722, 0.0
        %v727 = vmax.f32 %v723, 0.0
        %v728 = vmax.f32 %v724, 0.0
        %v729 = vmax.f32 %v725, 0.0
        %v730 = vld [vmem:[#allocation3] sm:$0xff]
        %v731 = vld [vmem:[#allocation3 + $0x8] sm:$0xff]
        %v732 = vld [vmem:[#allocation3 + $0x10] sm:$0xff]
        %v733 = vld [vmem:[#allocation3 + $0x18] sm:$0xff]
        %v734 = vld [vmem:[%s7] sm:$0xff]
        %v735 = vld [vmem:[%s7 + $0x8] sm:$0xff]
        %v736 = vld [vmem:[%s7 + $0x10] sm:$0xff]
        %v737 = vld [vmem:[%s7 + $0x18] sm:$0xff]
        %739 = vset.pattern.permute.xlu0 0
        %740 = vperm.xlu0 %739, %v734
        %v741 = vpop.permute.xlu0 %740
        %744 = vset.pattern.permute.xlu0 0
        %745 = vperm.xlu0 %744, %v735
        %v746 = vpop.permute.xlu0 %745
        %749 = vset.pattern.permute.xlu0 0
        %750 = vperm.xlu0 %749, %v736
        %v751 = vpop.permute.xlu0 %750
        %754 = vset.pattern.permute.xlu0 0
        %755 = vperm.xlu0 %754, %v737
        %v756 = vpop.permute.xlu0 %755
        %vm758 = vcmask 261120
        %v760 = vsel %vm758, %v730, 0
        %v763 = vsel %vm758, %v731, 0
        %v766 = vsel %vm758, %v732, 0
        %v769 = vsel %vm758, %v733, 0
        %771 = vmatpush.msra.mxu0 0.0
        %772 = vmatpush.msra.mxu0 0.0
        %773 = vmatpush.msra.mxu0 0.0
        %774 = vmatpush.msra.mxu0 0.0
        %775 = vmatpush.msra.mxu0 0.0
        %776 = vmatpush.msra.mxu0 0.0
        %777 = vmatpush.msra.mxu0 0.0
        %778 = vmatpush.msra.mxu0 0.0
        %779 = vmatpush.msra.mxu0 0.0
        %780 = vmatpush.msra.mxu0 0.0
        %781 = vmatpush.msra.mxu0 0.0
        %782 = vmatpush.msra.mxu0 0.0
        %783 = vmatpush.msra.mxu0 %v729
        %784 = vmatpush.msra.mxu0 %v728
        %785 = vmatpush.msra.mxu0 %v727
        %786 = vmatpush.msra.mxu0 %v726
        %787 = vmatmul.f32.gmra.mxu0 %v760
        %v788 = vpop.f32.mrf.mxu0
        %v789 = vadd.f32 %v741, %v788
        %790 = vmatmul.f32.gmra.mxu0 %v763
        %v791 = vpop.f32.mrf.mxu0
        %v792 = vadd.f32 %v746, %v791
        %793 = vmatmul.f32.gmra.mxu0 %v766
        %v794 = vpop.f32.mrf.mxu0
        %v795 = vadd.f32 %v751, %v794
        %796 = vmatmul.f32.gmra.mxu0 %v769
        %v797 = vpop.f32.mrf.mxu0
        %v798 = vadd.f32 %v756, %v797
        %799 = vdwg.mxu0
        %v800 = vmul.f32 %v789, %v789
        %v801 = vmul.f32 %v792, %v792
        %v802 = vmul.f32 %v795, %v795
        %v803 = vmul.f32 %v798, %v798
        %v804 = vadd.f32 %v800, %v801
        %v805 = vadd.f32 %v804, %v802
        %v806 = vadd.f32 %v805, %v803
        %v807 = vrot.slane %v806, 4
        %v808 = vadd.f32 %v806, %v807
        %v809 = vrot.slane %v808, 2
        %v810 = vadd.f32 %v808, %v809
        %v811 = vrot.slane %v810, 1
        %v812 = vadd.f32 %v810, %v811
        %v813 = vadd.f32 %v812, 1e-06
        %v814 = vrsqrt.pop %v813
        %v815 = vmul.f32 %v814, %v813
        %v816 = vmul.f32 %v815, %v814
        %v817 = vmul.f32 0.5, %v816
        %v818 = vsub.f32 1.5, %v817
        %v819 = vmul.f32 %v814, %v818
        %vm820 = vweird.f32 %v813
        %vm821 = vweird.f32 %v814
        %vm822 = vmor %vm820, %vm821
        %v823 = vsel %vm822, %v814, %v819
        %v824 = vmul.f32 %v823, 10.0
        %v825 = vmul.f32 %v789, %v824
        %v826 = vmul.f32 %v792, %v824
        %v827 = vmul.f32 %v795, %v824
        %v828 = vmul.f32 %v798, %v824
        %v829 = vpack.c.bf16 %v826, %v825
        %v830 = vpack.c.bf16 %v828, %v827
        %v831 = vld [vmem:[%s595] sm:$0xf]
        %v832 = vld [vmem:[%s595 + $0x8] sm:$0xf]
        %v833 = vld [vmem:[%s595 + $0x10] sm:$0xf]
        %v834 = vld [vmem:[%s595 + $0x18] sm:$0xf]
        %v835 = vld [vmem:[%s600] sm:$0x3]
        %836 = vxpose.xlu0.c.b16.start [1/8] %v829, 128
        %837 = vxpose.xlu0.c.b16.cont [2/8] %v830, 128
        %838 = vxpose.xlu0.c.b16.cont [3/8] 0, 128
        %839 = vxpose.xlu0.c.b16.cont [4/8] 0, 128
        %840 = vxpose.xlu0.c.b16.cont [5/8] 0, 128
        %841 = vxpose.xlu0.c.b16.cont [6/8] 0, 128
        %842 = vxpose.xlu0.c.b16.cont [7/8] 0, 128
        %843 = vxpose.xlu0.c.b16.end [8/8] 0, 128
        %v844 = vpop.trf.xlu0
        %v845 = vpop.trf.xlu0
        %v846 = vpop.trf.xlu0
        %v847 = vpop.trf.xlu0
        %v848 = vpop.trf.xlu0
        %v849 = vpop.trf.xlu0
        %v850 = vpop.trf.xlu0
        %v851 = vpop.trf.xlu0
        %v856 = vunpack.c.l.b16 %v831
        %v857 = vunpack.c.l.b16 %v832
        %v858 = vunpack.c.l.b16 %v833
        %v859 = vunpack.c.l.b16 %v834
        %v860 = vpack.c.b16 %v857, %v856
        %v861 = vpack.c.b16 %v859, %v858
        %v865 = vsel %vm758, %v844, 0
        %v868 = vsel %vm758, %v845, 0
        %v871 = vsel %vm758, %v846, 0
        %v874 = vsel %vm758, %v847, 0
        %v877 = vsel %vm758, %v848, 0
        %v880 = vsel %vm758, %v849, 0
        %v883 = vsel %vm758, %v850, 0
        %v886 = vsel %vm758, %v851, 0
        %888 = vmatpush.bf16.msra.mxu0 0
        %889 = vmatpush.bf16.msra.mxu0 0
        %890 = vmatpush.bf16.msra.mxu0 0
        %891 = vmatpush.bf16.msra.mxu0 0
        %892 = vmatpush.bf16.msra.mxu0 0
        %893 = vmatpush.bf16.msra.mxu0 0
        %894 = vmatpush.bf16.msra.mxu0 %v861
        %895 = vmatpush.bf16.msra.mxu0 %v860
        %896 = vmatmul.bf16.gmra.mxu0 %v865
        %v897 = vpop.f32.mrf.mxu0
        %v898 = vadd.f32 0.0, %v897
        %v899 = vpop.f32.mrf.mxu0
        %v900 = vadd.f32 0.0, %v899
        %901 = vmatmul.bf16.gmra.mxu0 %v868
        %v902 = vpop.f32.mrf.mxu0
        %v903 = vadd.f32 0.0, %v902
        %v904 = vpop.f32.mrf.mxu0
        %v905 = vadd.f32 0.0, %v904
        %906 = vmatmul.bf16.gmra.mxu0 %v871
        %v907 = vpop.f32.mrf.mxu0
        %v908 = vadd.f32 0.0, %v907
        %v909 = vpop.f32.mrf.mxu0
        %v910 = vadd.f32 0.0, %v909
        %911 = vmatmul.bf16.gmra.mxu0 %v874
        %v912 = vpop.f32.mrf.mxu0
        %v913 = vadd.f32 0.0, %v912
        %v914 = vpop.f32.mrf.mxu0
        %v915 = vadd.f32 0.0, %v914
        %916 = vmatmul.bf16.gmra.mxu0 %v877
        %v917 = vpop.f32.mrf.mxu0
        %v918 = vadd.f32 0.0, %v917
        %v919 = vpop.f32.mrf.mxu0
        %v920 = vadd.f32 0.0, %v919
        %921 = vmatmul.bf16.gmra.mxu0 %v880
        %v922 = vpop.f32.mrf.mxu0
        %v923 = vadd.f32 0.0, %v922
        %v924 = vpop.f32.mrf.mxu0
        %v925 = vadd.f32 0.0, %v924
        %926 = vmatmul.bf16.gmra.mxu0 %v883
        %v927 = vpop.f32.mrf.mxu0
        %v928 = vadd.f32 0.0, %v927
        %v929 = vpop.f32.mrf.mxu0
        %v930 = vadd.f32 0.0, %v929
        %931 = vmatmul.bf16.gmra.mxu0 %v886
        %v932 = vpop.f32.mrf.mxu0
        %v933 = vadd.f32 0.0, %v932
        %v934 = vpop.f32.mrf.mxu0
        %v935 = vadd.f32 0.0, %v934
        %936 = vdwg.mxu0
        %v937 = vmul.f32 %v898, 1.442695
        %v938 = vpow.pop %v937
        %v939 = vmul.f32 %v900, 1.442695
        %v940 = vpow.pop %v939
        %v941 = vmul.f32 %v903, 1.442695
        %v942 = vpow.pop %v941
        %v943 = vmul.f32 %v905, 1.442695
        %v944 = vpow.pop %v943
        %v945 = vmul.f32 %v908, 1.442695
        %v946 = vpow.pop %v945
        %v947 = vmul.f32 %v910, 1.442695
        %v948 = vpow.pop %v947
        %v949 = vmul.f32 %v913, 1.442695
        %v950 = vpow.pop %v949
        %v951 = vmul.f32 %v915, 1.442695
        %v952 = vpow.pop %v951
        %v953 = vmul.f32 %v918, 1.442695
        %v954 = vpow.pop %v953
        %v955 = vmul.f32 %v920, 1.442695
        %v956 = vpow.pop %v955
        %v957 = vmul.f32 %v923, 1.442695
        %v958 = vpow.pop %v957
        %v959 = vmul.f32 %v925, 1.442695
        %v960 = vpow.pop %v959
        %v961 = vmul.f32 %v928, 1.442695
        %v962 = vpow.pop %v961
        %v963 = vmul.f32 %v930, 1.442695
        %v964 = vpow.pop %v963
        %v965 = vmul.f32 %v933, 1.442695
        %v966 = vpow.pop %v965
        %v967 = vmul.f32 %v935, 1.442695
        %v968 = vpow.pop %v967
        %v969 = vpack.c.bf16 %v940, %v938
        %v970 = vpack.c.bf16 %v944, %v942
        %v971 = vpack.c.bf16 %v948, %v946
        %v972 = vpack.c.bf16 %v952, %v950
        %v973 = vpack.c.bf16 %v956, %v954
        %v974 = vpack.c.bf16 %v960, %v958
        %v975 = vpack.c.bf16 %v964, %v962
        %v976 = vpack.c.bf16 %v968, %v966
        %s977 = scalar_lea.vmem %s595, 4
        %v978 = vld [vmem:[%s977] sm:$0xf]
        %v979 = vld [vmem:[%s977 + $0x8] sm:$0xf]
        %v980 = vld [vmem:[%s977 + $0x10] sm:$0xf]
        %v981 = vld [vmem:[%s977 + $0x18] sm:$0xf]
        %s982 = scalar_lea.vmem %s600, 2
        %v983 = vld [vmem:[%s982] sm:$0x3]
        %v988 = vunpack.c.l.b16 %v978
        %v989 = vunpack.c.l.b16 %v979
        %v990 = vunpack.c.l.b16 %v980
        %v991 = vunpack.c.l.b16 %v981
        %v992 = vpack.c.b16 %v989, %v988
        %v993 = vpack.c.b16 %v991, %v990
        %996 = vmatpush.bf16.msra.mxu0 0
        %997 = vmatpush.bf16.msra.mxu0 0
        %998 = vmatpush.bf16.msra.mxu0 0
        %999 = vmatpush.bf16.msra.mxu0 0
        %1000 = vmatpush.bf16.msra.mxu0 0
        %1001 = vmatpush.bf16.msra.mxu0 0
        %1002 = vmatpush.bf16.msra.mxu0 %v993
        %1003 = vmatpush.bf16.msra.mxu0 %v992
        %1004 = vmatmul.bf16.gmra.mxu0 %v865
        %v1005 = vpop.f32.mrf.mxu0
        %v1006 = vadd.f32 0.0, %v1005
        %v1007 = vpop.f32.mrf.mxu0
        %v1008 = vadd.f32 0.0, %v1007
        %1009 = vmatmul.bf16.gmra.mxu0 %v868
        %v1010 = vpop.f32.mrf.mxu0
        %v1011 = vadd.f32 0.0, %v1010
        %v1012 = vpop.f32.mrf.mxu0
        %v1013 = vadd.f32 0.0, %v1012
        %1014 = vmatmul.bf16.gmra.mxu0 %v871
        %v1015 = vpop.f32.mrf.mxu0
        %v1016 = vadd.f32 0.0, %v1015
        %v1017 = vpop.f32.mrf.mxu0
        %v1018 = vadd.f32 0.0, %v1017
        %1019 = vmatmul.bf16.gmra.mxu0 %v874
        %v1020 = vpop.f32.mrf.mxu0
        %v1021 = vadd.f32 0.0, %v1020
        %v1022 = vpop.f32.mrf.mxu0
        %v1023 = vadd.f32 0.0, %v1022
        %1024 = vmatmul.bf16.gmra.mxu0 %v877
        %v1025 = vpop.f32.mrf.mxu0
        %v1026 = vadd.f32 0.0, %v1025
        %v1027 = vpop.f32.mrf.mxu0
        %v1028 = vadd.f32 0.0, %v1027
        %1029 = vmatmul.bf16.gmra.mxu0 %v880
        %v1030 = vpop.f32.mrf.mxu0
        %v1031 = vadd.f32 0.0, %v1030
        %v1032 = vpop.f32.mrf.mxu0
        %v1033 = vadd.f32 0.0, %v1032
        %1034 = vmatmul.bf16.gmra.mxu0 %v883
        %v1035 = vpop.f32.mrf.mxu0
        %v1036 = vadd.f32 0.0, %v1035
        %v1037 = vpop.f32.mrf.mxu0
        %v1038 = vadd.f32 0.0, %v1037
        %1039 = vmatmul.bf16.gmra.mxu0 %v886
        %v1040 = vpop.f32.mrf.mxu0
        %v1041 = vadd.f32 0.0, %v1040
        %v1042 = vpop.f32.mrf.mxu0
        %v1043 = vadd.f32 0.0, %v1042
        %1044 = vdwg.mxu0
        %v1045 = vmul.f32 %v1006, 1.442695
        %v1046 = vpow.pop %v1045
        %v1047 = vmul.f32 %v1008, 1.442695
        %v1048 = vpow.pop %v1047
        %v1049 = vmul.f32 %v1011, 1.442695
        %v1050 = vpow.pop %v1049
        %v1051 = vmul.f32 %v1013, 1.442695
        %v1052 = vpow.pop %v1051
        %v1053 = vmul.f32 %v1016, 1.442695
        %v1054 = vpow.pop %v1053
        %v1055 = vmul.f32 %v1018, 1.442695
        %v1056 = vpow.pop %v1055
        %v1057 = vmul.f32 %v1021, 1.442695
        %v1058 = vpow.pop %v1057
        %v1059 = vmul.f32 %v1023, 1.442695
        %v1060 = vpow.pop %v1059
        %v1061 = vmul.f32 %v1026, 1.442695
        %v1062 = vpow.pop %v1061
        %v1063 = vmul.f32 %v1028, 1.442695
        %v1064 = vpow.pop %v1063
        %v1065 = vmul.f32 %v1031, 1.442695
        %v1066 = vpow.pop %v1065
        %v1067 = vmul.f32 %v1033, 1.442695
        %v1068 = vpow.pop %v1067
        %v1069 = vmul.f32 %v1036, 1.442695
        %v1070 = vpow.pop %v1069
        %v1071 = vmul.f32 %v1038, 1.442695
        %v1072 = vpow.pop %v1071
        %v1073 = vmul.f32 %v1041, 1.442695
        %v1074 = vpow.pop %v1073
        %v1075 = vmul.f32 %v1043, 1.442695
        %v1076 = vpow.pop %v1075
        %v1077 = vpack.c.bf16 %v1048, %v1046
        %v1078 = vpack.c.bf16 %v1052, %v1050
        %v1079 = vpack.c.bf16 %v1056, %v1054
        %v1080 = vpack.c.bf16 %v1060, %v1058
        %v1081 = vpack.c.bf16 %v1064, %v1062
        %v1082 = vpack.c.bf16 %v1068, %v1066
        %v1083 = vpack.c.bf16 %v1072, %v1070
        %v1084 = vpack.c.bf16 %v1076, %v1074
        %1085 = vmatpush.bf16.xpose.msra.mxu0 %v1084
        %1086 = vmatpush.bf16.xpose.msra.mxu0 %v1083
        %1087 = vmatpush.bf16.xpose.msra.mxu0 %v1082
        %1088 = vmatpush.bf16.xpose.msra.mxu0 %v1081
        %1089 = vmatpush.bf16.xpose.msra.mxu0 %v1080
        %1090 = vmatpush.bf16.xpose.msra.mxu0 %v1079
        %1091 = vmatpush.bf16.xpose.msra.mxu0 %v1078
        %1092 = vmatpush.bf16.xpose.msra.mxu0 %v1077
        %1093 = vmatmul.bf16.gmra.mxu0 %v983
        %v1094 = vpop.f32.mrf.mxu0
        %v1095 = vadd.f32 0.0, %v1094
        %v1096 = vpop.f32.mrf.mxu0
        %1097 = vdwg.mxu0
        %1098 = vmatpush.bf16.xpose.msra.mxu0 %v976
        %1099 = vmatpush.bf16.xpose.msra.mxu0 %v975
        %1100 = vmatpush.bf16.xpose.msra.mxu0 %v974
        %1101 = vmatpush.bf16.xpose.msra.mxu0 %v973
        %1102 = vmatpush.bf16.xpose.msra.mxu0 %v972
        %1103 = vmatpush.bf16.xpose.msra.mxu0 %v971
        %1104 = vmatpush.bf16.xpose.msra.mxu0 %v970
        %1105 = vmatpush.bf16.xpose.msra.mxu0 %v969
        %1106 = vmatmul.bf16.gmra.mxu0 %v835
        %v1107 = vpop.f32.mrf.mxu0
        %v1108 = vadd.f32 %v1095, %v1107
        %v1109 = vpop.f32.mrf.mxu0
        %1110 = vdwg.mxu0
        %v1111 = vrcp.pop %v1108
        %v1112 = vperm.slane %v1111, 3
        %v1113 = vmul.f32 %v1108, %v1112
        %v1114 = vld [vmem:[%s519] sm:$0xff]
        %v1115 = vld [vmem:[%s519 + $0x8] sm:$0xff]
        %v1116 = vld [vmem:[%s519 + $0x10] sm:$0xff]
        %v1117 = vld [vmem:[%s519 + $0x18] sm:$0xff]
        %v1118 = vld [vmem:[%s9] sm:$0xff]
        %v1119 = vld [vmem:[%s9 + $0x8] sm:$0xff]
        %v1120 = vld [vmem:[%s9 + $0x10] sm:$0xff]
        %v1121 = vld [vmem:[%s9 + $0x18] sm:$0xff]
        %v1122 = vld [vmem:[#allocation5] sm:$0xff]
        %v1123 = vld [vmem:[#allocation5 + $0x8] sm:$0xff]
        %v1124 = vld [vmem:[#allocation5 + $0x10] sm:$0xff]
        %v1125 = vld [vmem:[#allocation5 + $0x18] sm:$0xff]
        %1127 = vset.pattern.permute.xlu0 0
        %1128 = vperm.xlu0 %1127, %v1118
        %v1129 = vpop.permute.xlu0 %1128
        %1132 = vset.pattern.permute.xlu0 0
        %1133 = vperm.xlu0 %1132, %v1119
        %v1134 = vpop.permute.xlu0 %1133
        %1137 = vset.pattern.permute.xlu0 0
        %1138 = vperm.xlu0 %1137, %v1120
        %v1139 = vpop.permute.xlu0 %1138
        %1142 = vset.pattern.permute.xlu0 0
        %1143 = vperm.xlu0 %1142, %v1121
        %v1144 = vpop.permute.xlu0 %1143
        %v1146 = vperm.slane %v1113, 0
        %v1147 = vmul.f32 %v1129, %v1146
        %v1148 = vmul.f32 %v1134, %v1146
        %v1149 = vmul.f32 %v1139, %v1146
        %v1150 = vmul.f32 %v1144, %v1146
        %v1152 = vsel %vm758, %v1122, 0
        %v1155 = vsel %vm758, %v1123, 0
        %v1158 = vsel %vm758, %v1124, 0
        %v1161 = vsel %vm758, %v1125, 0
        %1163 = vmatpush.msra.mxu0 0.0
        %1164 = vmatpush.msra.mxu0 0.0
        %1165 = vmatpush.msra.mxu0 0.0
        %1166 = vmatpush.msra.mxu0 0.0
        %1167 = vmatpush.msra.mxu0 0.0
        %1168 = vmatpush.msra.mxu0 0.0
        %1169 = vmatpush.msra.mxu0 0.0
        %1170 = vmatpush.msra.mxu0 0.0
        %1171 = vmatpush.msra.mxu0 0.0
        %1172 = vmatpush.msra.mxu0 0.0
        %1173 = vmatpush.msra.mxu0 0.0
        %1174 = vmatpush.msra.mxu0 0.0
        %1175 = vmatpush.msra.mxu0 %v1117
        %1176 = vmatpush.msra.mxu0 %v1116
        %1177 = vmatpush.msra.mxu0 %v1115
        %1178 = vmatpush.msra.mxu0 %v1114
        %1179 = vmatmul.f32.gmra.mxu0 %v1152
        %v1180 = vpop.f32.mrf.mxu0
        %v1181 = vadd.f32 %v1147, %v1180
        %1182 = vmatmul.f32.gmra.mxu0 %v1155
        %v1183 = vpop.f32.mrf.mxu0
        %v1184 = vadd.f32 %v1148, %v1183
        %1185 = vmatmul.f32.gmra.mxu0 %v1158
        %v1186 = vpop.f32.mrf.mxu0
        %v1187 = vadd.f32 %v1149, %v1186
        %1188 = vmatmul.f32.gmra.mxu0 %v1161
        %v1189 = vpop.f32.mrf.mxu0
        %v1190 = vadd.f32 %v1150, %v1189
        %1191 = vdwg.mxu0
        %1192 = vset.pattern.permute.xlu0 1
        %1193 = vperm.xlu0 %1192, %v1118
        %v1194 = vpop.permute.xlu0 %1193
        %1196 = vset.pattern.permute.xlu0 1
        %1197 = vperm.xlu0 %1196, %v1119
        %v1198 = vpop.permute.xlu0 %1197
        %1200 = vset.pattern.permute.xlu0 1
        %1201 = vperm.xlu0 %1200, %v1120
        %v1202 = vpop.permute.xlu0 %1201
        %1204 = vset.pattern.permute.xlu0 1
        %1205 = vperm.xlu0 %1204, %v1121
        %v1206 = vpop.permute.xlu0 %1205
        %v1208 = vperm.slane %v1113, 1
        %v1209 = vmul.f32 %v1194, %v1208
        %v1210 = vmul.f32 %v1198, %v1208
        %v1211 = vmul.f32 %v1202, %v1208
        %v1212 = vmul.f32 %v1206, %v1208
        %v1213 = vadd.f32 %v1181, %v1209
        %v1214 = vadd.f32 %v1184, %v1210
        %v1215 = vadd.f32 %v1187, %v1211
        %v1216 = vadd.f32 %v1190, %v1212
        %1217 = vset.pattern.permute.xlu0 2
        %1218 = vperm.xlu0 %1217, %v1118
        %v1219 = vpop.permute.xlu0 %1218
        %1221 = vset.pattern.permute.xlu0 2
        %1222 = vperm.xlu0 %1221, %v1119
        %v1223 = vpop.permute.xlu0 %1222
        %1225 = vset.pattern.permute.xlu0 2
        %1226 = vperm.xlu0 %1225, %v1120
        %v1227 = vpop.permute.xlu0 %1226
        %1229 = vset.pattern.permute.xlu0 2
        %1230 = vperm.xlu0 %1229, %v1121
        %v1231 = vpop.permute.xlu0 %1230
        %v1233 = vperm.slane %v1113, 2
        %v1234 = vmul.f32 %v1219, %v1233
        %v1235 = vmul.f32 %v1223, %v1233
        %v1236 = vmul.f32 %v1227, %v1233
        %v1237 = vmul.f32 %v1231, %v1233
        %v1238 = vadd.f32 %v1213, %v1234
        %v1239 = vadd.f32 %v1214, %v1235
        %v1240 = vadd.f32 %v1215, %v1236
        %v1241 = vadd.f32 %v1216, %v1237
        %v1242 = vld [vmem:[%s10] sm:$0xff]
        %v1243 = vld [vmem:[%s10 + $0x8] sm:$0xff]
        %v1244 = vld [vmem:[%s10 + $0x10] sm:$0xff]
        %v1245 = vld [vmem:[%s10 + $0x18] sm:$0xff]
        %1247 = vset.pattern.permute.xlu0 0
        %1248 = vperm.xlu0 %1247, %v1242
        %v1249 = vpop.permute.xlu0 %1248
        %1252 = vset.pattern.permute.xlu0 0
        %1253 = vperm.xlu0 %1252, %v1243
        %v1254 = vpop.permute.xlu0 %1253
        %1257 = vset.pattern.permute.xlu0 0
        %1258 = vperm.xlu0 %1257, %v1244
        %v1259 = vpop.permute.xlu0 %1258
        %1262 = vset.pattern.permute.xlu0 0
        %1263 = vperm.xlu0 %1262, %v1245
        %v1264 = vpop.permute.xlu0 %1263
        %v1266 = vadd.f32 %v1238, %v1249
        %v1267 = vadd.f32 %v1239, %v1254
        %v1268 = vadd.f32 %v1240, %v1259
        %v1269 = vadd.f32 %v1241, %v1264
        %v1270 = vmax.f32 %v1266, 0.0
        %v1271 = vmax.f32 %v1267, 0.0
        %v1272 = vmax.f32 %v1268, 0.0
        %v1273 = vmax.f32 %v1269, 0.0
        %v1274 = vld [vmem:[%s11] sm:$0x7]
        %v1275 = vld [vmem:[%s12] sm:$0x7]
        %1277 = vset.pattern.permute.xlu0 0
        %1278 = vperm.xlu0 %1277, %v1275
        %v1279 = vpop.permute.xlu0 %1278
        %v1282 = vsel %vm758, %v1274, 0
        %1284 = vmatpush.msra.mxu0 0.0
        %1285 = vmatpush.msra.mxu0 0.0
        %1286 = vmatpush.msra.mxu0 0.0
        %1287 = vmatpush.msra.mxu0 0.0
        %1288 = vmatpush.msra.mxu0 0.0
        %1289 = vmatpush.msra.mxu0 0.0
        %1290 = vmatpush.msra.mxu0 0.0
        %1291 = vmatpush.msra.mxu0 0.0
        %1292 = vmatpush.msra.mxu0 0.0
        %1293 = vmatpush.msra.mxu0 0.0
        %1294 = vmatpush.msra.mxu0 0.0
        %1295 = vmatpush.msra.mxu0 0.0
        %1296 = vmatpush.msra.mxu0 %v1273
        %1297 = vmatpush.msra.mxu0 %v1272
        %1298 = vmatpush.msra.mxu0 %v1271
        %1299 = vmatpush.msra.mxu0 %v1270
        %1300 = vmatmul.f32.gmra.mxu0 %v1282
        %v1301 = vpop.f32.mrf.mxu0
        %v1302 = vadd.f32 %v1279, %v1301
        %1303 = vdwg.mxu0
        %1304 = vst [vmem:[%s616] sm:$0x7] %v1302
        %1305 = vst [vmem:[%s616 + $0x3] sm:$0x7] %v1113
        %p1306 = scmp.lt.s32.totalorder %s30, 1
        %s1307 = scalar_select %p1306, %s30, 1
        %p1308 = scmp.lt.s32.totalorder %s31, 1
        %s1309 = scalar_select %p1308, %s31, 1
        %s1310 = smul.addr %s1307, 2
        %s1311 = sadd.s32 %s1309, %s1310
        %s1312 = smul.addr %s1311, 8
        %s1313 = scalar_lea.vmem %s13, %s1312
        // Predicated region
        $region119: #{tpu_custom_call.1} parent=105 // pred_check
          %p1314 = pneg %p355
        $region120: #{tpu_custom_call.1} parent=105 // pred_check_branch
          %1316 = sbr.rel (%p1314) target = $region122
        $region121: #{tpu_custom_call.1} parent=105 // pred_region
          _
        $region122: #{tpu_custom_call.1} parent=105 // pred_fallthru
          _
      $region106: #{tpu_custom_call.1} parent=5 // pred_fallthru
        _
      %p1317 = scmp.le.s32.totalorder 2, %s21
      // Predicated region
      $region123: #{tpu_custom_call.1} parent=5 // pred_check
        %p1318 = pneg %p1317
      $region124: #{tpu_custom_call.1} parent=5 // pred_check_branch
        %1320 = sbr.rel (%p1318) target = $region126
      $region125: #{tpu_custom_call.1} parent=5 // pred_region
        %s1321 = ssub.s32 %s21, 2
        // Predicated region
        $region127: #{tpu_custom_call.1} parent=125 // pred_check
          %p1322 = pneg %p361
        $region128: #{tpu_custom_call.1} parent=125 // pred_check_branch
          %1324 = sbr.rel (%p1322) target = $region130
        $region129: #{tpu_custom_call.1} parent=125 // pred_region
          %p1325 = scmp.lt.s32.totalorder %s32, 1
          %s1326 = scalar_select %p1325, %s32, 1
          %p1327 = scmp.lt.s32.totalorder %s33, 1
          %s1328 = scalar_select %p1327, %s33, 1
          %s1329 = smul.addr %s1326, 2
          %s1330 = sadd.s32 %s1328, %s1329
          %s1331 = smul.addr %s1330, 8
          %s1332 = scalar_lea.vmem %s13, %s1331
        $region130: #{tpu_custom_call.1} parent=125 // pred_fallthru
          _
      $region126: #{tpu_custom_call.1} parent=5 // pred_fallthru
        _
    $region6: #{tpu_custom_call.1} parent=1 // loop_footer
      %s25 = sadd.s32 1, %s21
    $region7: #{tpu_custom_call.1} parent=1 // loop_footer_branch
      %20 = sbr.rel target = $region3
    $region8: #{tpu_custom_call.1} parent=1 // loop_exit
      _
    %1333 = vsyncpa [#allocation4], 1
    %s1334 = scalar_lea.sflag [#allocation4], 1
    %1335 = vsyncpa %s1334, 1
    %1336 = vsyncpa [#allocation6], 1

</llo_original>
